<compile_context>
chip_gen: v7x
topology: tpu7x:2x2x1
jax: 0.10.0
libtpu: 0.0.40
codegen_flags: <defaults>
</compile_context>

<pallas_src>
import functools

import jax
import jax.numpy as jnp
from jax import lax
from jax.experimental import pallas as pl
from jax.experimental.pallas import tpu as pltpu


def _round_up(x: int, m: int) -> int:
    return ((x + m - 1) // m) * m


def _vmem_limit_bytes() -> int:
    """Scoped-VMEM budget from the actual chip (v5e/v6e: 128 MiB, v7x: 64 MiB)."""
    cap = None
    try:
        cap = getattr(pltpu.get_tpu_info(), "vmem_capacity_bytes", None)
    except Exception:
        cap = None
    if not cap:
        cap = 64 * 1024 * 1024          # conservative: v7x per-TensorCore capacity
    return min(int(cap) * 3 // 4, 96 * 1024 * 1024)


def _gather_mean_kernel(ids_ref, emb_ref, h_ref, acc_ref, *, num_ctx):
    # ids_ref : SMEM [B_pad * C] int32   (scalar-prefetched, flattened 1-D)
    # emb_ref : VMEM [V_rows, E_pad] f32 (pre-renormalized table, resident)
    # h_ref   : VMEM [TB, E_pad] bf16    output: mean context embedding
    # acc_ref : VMEM [TB, E_pad] f32     scratch accumulator
    i = pl.program_id(0)
    tb, e_pad = acc_ref.shape
    row0 = i * tb
    inv_c = jnp.float32(1.0 / num_ctx)

    def blk_body(bk, carry):
        r0 = pl.multiple_of(bk * 8, 8)
        rows = []
        for r in range(8):                       # 8 rows -> one full (8, 128) f32 store
            acc = jnp.zeros((1, e_pad), jnp.float32)
            for c in range(num_ctx):             # small static context window: unrolled
                tok = ids_ref[(row0 + r0 + r) * num_ctx + c]
                acc = acc + emb_ref[pl.ds(tok, 1), :]
            rows.append(acc)
        acc_ref[pl.ds(r0, 8), :] = jnp.concatenate(rows, axis=0) * inv_c
        return carry

    lax.fori_loop(0, tb // 8, blk_body, 0)
    # One whole-block f32 -> bf16 conversion per batch tile (not per vocab tile).
    h_ref[...] = acc_ref[...].astype(h_ref.dtype)


def _linear_kernel(h_ref, w_ref, b_ref, out_ref):
    # h_ref: [TB, E_pad] bf16, w_ref: [E_pad, TV] bf16, b_ref: [1, TV] f32
    logits = jnp.dot(h_ref[...], w_ref[...], preferred_element_type=jnp.float32)
    out_ref[...] = (logits + b_ref[...]).astype(out_ref.dtype)


def cbow_forward(token_ids, emb_table, w, b, max_norm, *,
                 matmul_dtype=jnp.bfloat16, out_dtype=jnp.float32,
                 tb=None, tv=None):
    """CBOW forward: logits = Linear(mean(Embedding(token_ids), axis=1)).

    token_ids : [B, C] int32   context word indices
    emb_table : [V, E] f32     embedding weight
    w         : [E, V] f32     Linear weight (transpose of torch's [V, E])
    b         : [V]    f32     Linear bias
    """
    B, C = token_ids.shape
    V, E = emb_table.shape
    assert w.shape == (E, V) and b.shape == (V,)

    # ---- lane-dense padded shapes & tile sizes ------------------------------
    E_pad = _round_up(E, 128)
    V_rows = _round_up(V, 8)                           # sublane-pad the embedding table

    TV = tv if tv is not None else min(512, _round_up(V, 128))   # 512 fills v6e/v7x MXU
    assert TV % 128 == 0
    V_pad = _round_up(V, TV)

    TB = tb if tb is not None else min(256, _round_up(B, 16))    # 16-aligned for bf16 h
    assert TB % 8 == 0
    B_pad = _round_up(B, TB)

    # Token ids live in SMEM (flat 1-D avoids the 2-D SMEM padding blow-up).
    assert B_pad * C * 4 <= 256 * 1024, "token ids exceed SMEM budget"  # TODO(synk): chunk batch
    ids_p = jnp.zeros((B_pad, C), jnp.int32).at[:B].set(token_ids.astype(jnp.int32)).reshape(-1)

    # max_norm renorm hoisted out of the kernel: vectorized, once per table.
    emb_f32 = emb_table.astype(jnp.float32)
    if max_norm is not None:
        nrm = jnp.sqrt(jnp.sum(emb_f32 * emb_f32, axis=-1, keepdims=True))
        emb_f32 = emb_f32 * jnp.where(nrm > max_norm, max_norm / (nrm + 1e-7), 1.0)
    emb_p = jnp.zeros((V_rows, E_pad), jnp.float32).at[:V, :E].set(emb_f32)

    w_p = jnp.zeros((E_pad, V_pad), matmul_dtype).at[:E, :V].set(w.astype(matmul_dtype))
    b_p = jnp.zeros((1, V_pad), jnp.float32).at[0, :V].set(b.astype(jnp.float32))

    vmem_limit = _vmem_limit_bytes()
    emb_vmem = 2 * V_rows * E_pad * 4                 # default pipeliner double-buffers it
    assert emb_vmem + 8 * TB * E_pad < vmem_limit, (
        "embedding table does not fit VMEM")          # TODO(synk): DMA-gather path for huge vocab
    out_itemsize = jnp.dtype(out_dtype).itemsize

    # ---- kernel 1: gather + context mean -> h [B_pad, E_pad] (bf16) ---------
    h = pl.pallas_call(
        functools.partial(_gather_mean_kernel, num_ctx=C),
        out_shape=jax.ShapeDtypeStruct((B_pad, E_pad), matmul_dtype),
        grid_spec=pltpu.PrefetchScalarGridSpec(
            num_scalar_prefetch=1,
            grid=(B_pad // TB,),
            in_specs=[
                # Embedding table resident across the grid (constant block index).
                # TODO(synk): single-buffer it (pipeline_mode=pl.Buffered(1)) to
                # halve its VMEM footprint for very large vocabularies.
                pl.BlockSpec((V_rows, E_pad), lambda i, ids: (0, 0)),
            ],
            out_specs=pl.BlockSpec((TB, E_pad), lambda i, ids: (i, 0)),
            scratch_shapes=[pltpu.VMEM((TB, E_pad), jnp.float32)],
        ),
        compiler_params=pltpu.CompilerParams(
            dimension_semantics=("parallel",),
            vmem_limit_bytes=vmem_limit,
        ),
        cost_estimate=pl.CostEstimate(
            flops=B_pad * C * E_pad,
            transcendentals=0,
            bytes_accessed=V_rows * E_pad * 4 + B_pad * C * 4 + B_pad * E_pad * 2,
        ),
    )(ids_p, emb_p)

    # ---- kernel 2: logits = h @ W + b  (standard tiled MXU matmul) ----------
    out = pl.pallas_call(
        _linear_kernel,
        out_shape=jax.ShapeDtypeStruct((B_pad, V_pad), out_dtype),
        grid_spec=pltpu.PrefetchScalarGridSpec(
            num_scalar_prefetch=0,
            grid=(B_pad // TB, V_pad // TV),
            in_specs=[
                pl.BlockSpec((TB, E_pad), lambda i, j: (i, 0)),   # h tile (revisited over j)
                pl.BlockSpec((E_pad, TV), lambda i, j: (0, j)),   # W tile (streamed, double-buffered)
                pl.BlockSpec((1, TV), lambda i, j: (0, j)),       # bias tile
            ],
            out_specs=pl.BlockSpec((TB, TV), lambda i, j: (i, j)),
        ),
        compiler_params=pltpu.CompilerParams(
            # Both axes are independent (no reduction, no cross-step state), so
            # v7x's two TensorCores get work even with a single batch tile.
            dimension_semantics=("parallel", "parallel"),
            vmem_limit_bytes=vmem_limit,
        ),
        cost_estimate=pl.CostEstimate(
            flops=2 * B_pad * E_pad * V_pad,
            transcendentals=0,
            bytes_accessed=(B_pad * E_pad * 2 + E_pad * V_pad * 2 + V_pad * 4
                            + B_pad * V_pad * out_itemsize),
        ),
    )(h, w_p, b_p)

    return out[:B, :V]


def _reference(token_ids, emb_table, w, b, max_norm, matmul_dtype):
    g = emb_table[token_ids]                                     # [B, C, E]
    if max_norm is not None:
        nrm = jnp.sqrt(jnp.sum(g * g, axis=-1, keepdims=True))
        g = g * jnp.where(nrm > max_norm, max_norm / (nrm + 1e-7), 1.0)
    h = g.mean(axis=1)                                           # [B, E]
    hq = h.astype(matmul_dtype).astype(jnp.float32)
    wq = w.astype(matmul_dtype).astype(jnp.float32)
    return hq @ wq + b


if __name__ == "__main__":
    vocab_size = 512
    embedding_dim = 128
    context_len = 8        # 2 * CBOW window size
    batch = 24
    max_norm = 1.0

    key = jax.random.PRNGKey(0)
    k_ids, k_emb, k_w, k_b = jax.random.split(key, 4)

    token_ids = jax.random.randint(k_ids, (batch, context_len), 0, vocab_size, dtype=jnp.int32)
    emb_table = 0.09 * jax.random.normal(k_emb, (vocab_size, embedding_dim), jnp.float32)
    # torch nn.Linear(embedding_dim, vocab_size) weight is [V, E]; we hold its transpose.
    w = 0.05 * jax.random.normal(k_w, (embedding_dim, vocab_size), jnp.float32)
    b = 0.05 * jax.random.normal(k_b, (vocab_size,), jnp.float32)

    # tb=16 / tv=256 so the small test exercises multiple batch and vocab tiles.
    out = cbow_forward(token_ids, emb_table, w, b, max_norm, tb=16, tv=256)
    out = jax.block_until_ready(out)

    ref = _reference(token_ids, emb_table, w, b, max_norm, jnp.bfloat16)
    assert out.shape == (batch, vocab_size)
    max_diff = jnp.max(jnp.abs(out - ref))
    assert jnp.allclose(out, ref, atol=2e-3, rtol=2e-3), f"mismatch vs reference, max diff {max_diff}"

    print("KERNEL_OK")
</pallas_src>

<mosaic_0001>
module attributes {stable_mosaic.version = 11 : i64} {
  func.func @_gather_mean_kernel(%arg0: i32, %arg1: memref<256xi32, #tpu.memory_space<smem>>, %arg2: memref<512x128xf32, #tpu.memory_space<vmem>>, %arg3: memref<16x128xbf16, #tpu.memory_space<vmem>>, %arg4: memref<16x128xf32, #tpu.memory_space<vmem>>) attributes {dimension_semantics = [#tpu.dimension_semantics<parallel>], iteration_bounds = array<i64: 2>, scalar_prefetch = 1 : i64, scratch_operands = 1 : i64, tpu.core_type = #tpu.core_type<tc>, window_params = [{pipeline_mode = #tpu.pipeline_mode<synchronous>, transform_indices = @transform_0, window_bounds = array<i64: 512, 128>}, {transform_indices = @transform_1, window_bounds = array<i64: 16, 128>}]} {
    %c16_i32 = arith.constant 16 : i32
    %0 = arith.muli %arg0, %c16_i32 : i32
    %cst = arith.constant 1.250000e-01 : f32
    %c0_i32 = arith.constant 0 : i32
    %c2_i32 = arith.constant 2 : i32
    %1 = arith.addi %c0_i32, %c2_i32 : i32
    %c1_i32 = arith.constant 1 : i32
    scf.for %arg5 = %c0_i32 to %1 step %c1_i32  : i32 {
      %c8_i32 = arith.constant 8 : i32
      %5 = arith.muli %arg5, %c8_i32 : i32
      %6 = tpu.assume_multiple %5, 8 : i32
      %cst_4 = arith.constant 0.000000e+00 : f32
      %7 = vector.broadcast %cst_4 : f32 to vector<1x128xf32>
      %8 = arith.addi %0, %6 : i32
      %c0_i32_5 = arith.constant 0 : i32
      %9 = arith.addi %8, %c0_i32_5 : i32
      %c8_i32_6 = arith.constant 8 : i32
      %10 = arith.muli %9, %c8_i32_6 : i32
      %c0_i32_7 = arith.constant 0 : i32
      %11 = arith.addi %10, %c0_i32_7 : i32
      %12 = arith.index_cast %11 : i32 to index
      %13 = memref.load %arg1[%12] : memref<256xi32, #tpu.memory_space<smem>>
      %14 = arith.index_cast %13 : i32 to index
      %c0_8 = arith.constant 0 : index
      %15 = vector.load %arg2[%14, %c0_8] : memref<512x128xf32, #tpu.memory_space<vmem>>, vector<1x128xf32>
      %16 = arith.addf %7, %15 : vector<1x128xf32>
      %17 = arith.addi %0, %6 : i32
      %c0_i32_9 = arith.constant 0 : i32
      %18 = arith.addi %17, %c0_i32_9 : i32
      %c8_i32_10 = arith.constant 8 : i32
      %19 = arith.muli %18, %c8_i32_10 : i32
      %c1_i32_11 = arith.constant 1 : i32
      %20 = arith.addi %19, %c1_i32_11 : i32
      %21 = arith.index_cast %20 : i32 to index
      %22 = memref.load %arg1[%21] : memref<256xi32, #tpu.memory_space<smem>>
      %23 = arith.index_cast %22 : i32 to index
      %c0_12 = arith.constant 0 : index
      %24 = vector.load %arg2[%23, %c0_12] : memref<512x128xf32, #tpu.memory_space<vmem>>, vector<1x128xf32>
      %25 = arith.addf %16, %24 : vector<1x128xf32>
      %26 = arith.addi %0, %6 : i32
      %c0_i32_13 = arith.constant 0 : i32
      %27 = arith.addi %26, %c0_i32_13 : i32
      %c8_i32_14 = arith.constant 8 : i32
      %28 = arith.muli %27, %c8_i32_14 : i32
      %c2_i32_15 = arith.constant 2 : i32
      %29 = arith.addi %28, %c2_i32_15 : i32
      %30 = arith.index_cast %29 : i32 to index
      %31 = memref.load %arg1[%30] : memref<256xi32, #tpu.memory_space<smem>>
      %32 = arith.index_cast %31 : i32 to index
      %c0_16 = arith.constant 0 : index
      %33 = vector.load %arg2[%32, %c0_16] : memref<512x128xf32, #tpu.memory_space<vmem>>, vector<1x128xf32>
      %34 = arith.addf %25, %33 : vector<1x128xf32>
      %35 = arith.addi %0, %6 : i32
      %c0_i32_17 = arith.constant 0 : i32
      %36 = arith.addi %35, %c0_i32_17 : i32
      %c8_i32_18 = arith.constant 8 : i32
      %37 = arith.muli %36, %c8_i32_18 : i32
      %c3_i32 = arith.constant 3 : i32
      %38 = arith.addi %37, %c3_i32 : i32
      %39 = arith.index_cast %38 : i32 to index
      %40 = memref.load %arg1[%39] : memref<256xi32, #tpu.memory_space<smem>>
      %41 = arith.index_cast %40 : i32 to index
      %c0_19 = arith.constant 0 : index
      %42 = vector.load %arg2[%41, %c0_19] : memref<512x128xf32, #tpu.memory_space<vmem>>, vector<1x128xf32>
      %43 = arith.addf %34, %42 : vector<1x128xf32>
      %44 = arith.addi %0, %6 : i32
      %c0_i32_20 = arith.constant 0 : i32
      %45 = arith.addi %44, %c0_i32_20 : i32
      %c8_i32_21 = arith.constant 8 : i32
      %46 = arith.muli %45, %c8_i32_21 : i32
      %c4_i32 = arith.constant 4 : i32
      %47 = arith.addi %46, %c4_i32 : i32
      %48 = arith.index_cast %47 : i32 to index
      %49 = memref.load %arg1[%48] : memref<256xi32, #tpu.memory_space<smem>>
      %50 = arith.index_cast %49 : i32 to index
      %c0_22 = arith.constant 0 : index
      %51 = vector.load %arg2[%50, %c0_22] : memref<512x128xf32, #tpu.memory_space<vmem>>, vector<1x128xf32>
      %52 = arith.addf %43, %51 : vector<1x128xf32>
      %53 = arith.addi %0, %6 : i32
      %c0_i32_23 = arith.constant 0 : i32
      %54 = arith.addi %53, %c0_i32_23 : i32
      %c8_i32_24 = arith.constant 8 : i32
      %55 = arith.muli %54, %c8_i32_24 : i32
      %c5_i32 = arith.constant 5 : i32
      %56 = arith.addi %55, %c5_i32 : i32
      %57 = arith.index_cast %56 : i32 to index
      %58 = memref.load %arg1[%57] : memref<256xi32, #tpu.memory_space<smem>>
      %59 = arith.index_cast %58 : i32 to index
      %c0_25 = arith.constant 0 : index
      %60 = vector.load %arg2[%59, %c0_25] : memref<512x128xf32, #tpu.memory_space<vmem>>, vector<1x128xf32>
      %61 = arith.addf %52, %60 : vector<1x128xf32>
      %62 = arith.addi %0, %6 : i32
      %c0_i32_26 = arith.constant 0 : i32
      %63 = arith.addi %62, %c0_i32_26 : i32
      %c8_i32_27 = arith.constant 8 : i32
      %64 = arith.muli %63, %c8_i32_27 : i32
      %c6_i32 = arith.constant 6 : i32
      %65 = arith.addi %64, %c6_i32 : i32
      %66 = arith.index_cast %65 : i32 to index
      %67 = memref.load %arg1[%66] : memref<256xi32, #tpu.memory_space<smem>>
      %68 = arith.index_cast %67 : i32 to index
      %c0_28 = arith.constant 0 : index
      %69 = vector.load %arg2[%68, %c0_28] : memref<512x128xf32, #tpu.memory_space<vmem>>, vector<1x128xf32>
      %70 = arith.addf %61, %69 : vector<1x128xf32>
      %71 = arith.addi %0, %6 : i32
      %c0_i32_29 = arith.constant 0 : i32
      %72 = arith.addi %71, %c0_i32_29 : i32
      %c8_i32_30 = arith.constant 8 : i32
      %73 = arith.muli %72, %c8_i32_30 : i32
      %c7_i32 = arith.constant 7 : i32
      %74 = arith.addi %73, %c7_i32 : i32
      %75 = arith.index_cast %74 : i32 to index
      %76 = memref.load %arg1[%75] : memref<256xi32, #tpu.memory_space<smem>>
      %77 = arith.index_cast %76 : i32 to index
      %c0_31 = arith.constant 0 : index
      %78 = vector.load %arg2[%77, %c0_31] : memref<512x128xf32, #tpu.memory_space<vmem>>, vector<1x128xf32>
      %79 = arith.addf %70, %78 : vector<1x128xf32>
      %cst_32 = arith.constant 0.000000e+00 : f32
      %80 = vector.broadcast %cst_32 : f32 to vector<1x128xf32>
      %81 = arith.addi %0, %6 : i32
      %c1_i32_33 = arith.constant 1 : i32
      %82 = arith.addi %81, %c1_i32_33 : i32
      %c8_i32_34 = arith.constant 8 : i32
      %83 = arith.muli %82, %c8_i32_34 : i32
      %c0_i32_35 = arith.constant 0 : i32
      %84 = arith.addi %83, %c0_i32_35 : i32
      %85 = arith.index_cast %84 : i32 to index
      %86 = memref.load %arg1[%85] : memref<256xi32, #tpu.memory_space<smem>>
      %87 = arith.index_cast %86 : i32 to index
      %c0_36 = arith.constant 0 : index
      %88 = vector.load %arg2[%87, %c0_36] : memref<512x128xf32, #tpu.memory_space<vmem>>, vector<1x128xf32>
      %89 = arith.addf %80, %88 : vector<1x128xf32>
      %90 = arith.addi %0, %6 : i32
      %c1_i32_37 = arith.constant 1 : i32
      %91 = arith.addi %90, %c1_i32_37 : i32
      %c8_i32_38 = arith.constant 8 : i32
      %92 = arith.muli %91, %c8_i32_38 : i32
      %c1_i32_39 = arith.constant 1 : i32
      %93 = arith.addi %92, %c1_i32_39 : i32
      %94 = arith.index_cast %93 : i32 to index
      %95 = memref.load %arg1[%94] : memref<256xi32, #tpu.memory_space<smem>>
      %96 = arith.index_cast %95 : i32 to index
      %c0_40 = arith.constant 0 : index
      %97 = vector.load %arg2[%96, %c0_40] : memref<512x128xf32, #tpu.memory_space<vmem>>, vector<1x128xf32>
      %98 = arith.addf %89, %97 : vector<1x128xf32>
      %99 = arith.addi %0, %6 : i32
      %c1_i32_41 = arith.constant 1 : i32
      %100 = arith.addi %99, %c1_i32_41 : i32
      %c8_i32_42 = arith.constant 8 : i32
      %101 = arith.muli %100, %c8_i32_42 : i32
      %c2_i32_43 = arith.constant 2 : i32
      %102 = arith.addi %101, %c2_i32_43 : i32
      %103 = arith.index_cast %102 : i32 to index
      %104 = memref.load %arg1[%103] : memref<256xi32, #tpu.memory_space<smem>>
      %105 = arith.index_cast %104 : i32 to index
      %c0_44 = arith.constant 0 : index
      %106 = vector.load %arg2[%105, %c0_44] : memref<512x128xf32, #tpu.memory_space<vmem>>, vector<1x128xf32>
      %107 = arith.addf %98, %106 : vector<1x128xf32>
      %108 = arith.addi %0, %6 : i32
      %c1_i32_45 = arith.constant 1 : i32
      %109 = arith.addi %108, %c1_i32_45 : i32
      %c8_i32_46 = arith.constant 8 : i32
      %110 = arith.muli %109, %c8_i32_46 : i32
      %c3_i32_47 = arith.constant 3 : i32
      %111 = arith.addi %110, %c3_i32_47 : i32
      %112 = arith.index_cast %111 : i32 to index
      %113 = memref.load %arg1[%112] : memref<256xi32, #tpu.memory_space<smem>>
      %114 = arith.index_cast %113 : i32 to index
      %c0_48 = arith.constant 0 : index
      %115 = vector.load %arg2[%114, %c0_48] : memref<512x128xf32, #tpu.memory_space<vmem>>, vector<1x128xf32>
      %116 = arith.addf %107, %115 : vector<1x128xf32>
      %117 = arith.addi %0, %6 : i32
      %c1_i32_49 = arith.constant 1 : i32
      %118 = arith.addi %117, %c1_i32_49 : i32
      %c8_i32_50 = arith.constant 8 : i32
      %119 = arith.muli %118, %c8_i32_50 : i32
      %c4_i32_51 = arith.constant 4 : i32
      %120 = arith.addi %119, %c4_i32_51 : i32
      %121 = arith.index_cast %120 : i32 to index
      %122 = memref.load %arg1[%121] : memref<256xi32, #tpu.memory_space<smem>>
      %123 = arith.index_cast %122 : i32 to index
      %c0_52 = arith.constant 0 : index
      %124 = vector.load %arg2[%123, %c0_52] : memref<512x128xf32, #tpu.memory_space<vmem>>, vector<1x128xf32>
      %125 = arith.addf %116, %124 : vector<1x128xf32>
      %126 = arith.addi %0, %6 : i32
      %c1_i32_53 = arith.constant 1 : i32
      %127 = arith.addi %126, %c1_i32_53 : i32
      %c8_i32_54 = arith.constant 8 : i32
      %128 = arith.muli %127, %c8_i32_54 : i32
      %c5_i32_55 = arith.constant 5 : i32
      %129 = arith.addi %128, %c5_i32_55 : i32
      %130 = arith.index_cast %129 : i32 to index
      %131 = memref.load %arg1[%130] : memref<256xi32, #tpu.memory_space<smem>>
      %132 = arith.index_cast %131 : i32 to index
      %c0_56 = arith.constant 0 : index
      %133 = vector.load %arg2[%132, %c0_56] : memref<512x128xf32, #tpu.memory_space<vmem>>, vector<1x128xf32>
      %134 = arith.addf %125, %133 : vector<1x128xf32>
      %135 = arith.addi %0, %6 : i32
      %c1_i32_57 = arith.constant 1 : i32
      %136 = arith.addi %135, %c1_i32_57 : i32
      %c8_i32_58 = arith.constant 8 : i32
      %137 = arith.muli %136, %c8_i32_58 : i32
      %c6_i32_59 = arith.constant 6 : i32
      %138 = arith.addi %137, %c6_i32_59 : i32
      %139 = arith.index_cast %138 : i32 to index
      %140 = memref.load %arg1[%139] : memref<256xi32, #tpu.memory_space<smem>>
      %141 = arith.index_cast %140 : i32 to index
      %c0_60 = arith.constant 0 : index
      %142 = vector.load %arg2[%141, %c0_60] : memref<512x128xf32, #tpu.memory_space<vmem>>, vector<1x128xf32>
      %143 = arith.addf %134, %142 : vector<1x128xf32>
      %144 = arith.addi %0, %6 : i32
      %c1_i32_61 = arith.constant 1 : i32
      %145 = arith.addi %144, %c1_i32_61 : i32
      %c8_i32_62 = arith.constant 8 : i32
      %146 = arith.muli %145, %c8_i32_62 : i32
      %c7_i32_63 = arith.constant 7 : i32
      %147 = arith.addi %146, %c7_i32_63 : i32
      %148 = arith.index_cast %147 : i32 to index
      %149 = memref.load %arg1[%148] : memref<256xi32, #tpu.memory_space<smem>>
      %150 = arith.index_cast %149 : i32 to index
      %c0_64 = arith.constant 0 : index
      %151 = vector.load %arg2[%150, %c0_64] : memref<512x128xf32, #tpu.memory_space<vmem>>, vector<1x128xf32>
      %152 = arith.addf %143, %151 : vector<1x128xf32>
      %cst_65 = arith.constant 0.000000e+00 : f32
      %153 = vector.broadcast %cst_65 : f32 to vector<1x128xf32>
      %154 = arith.addi %0, %6 : i32
      %c2_i32_66 = arith.constant 2 : i32
      %155 = arith.addi %154, %c2_i32_66 : i32
      %c8_i32_67 = arith.constant 8 : i32
      %156 = arith.muli %155, %c8_i32_67 : i32
      %c0_i32_68 = arith.constant 0 : i32
      %157 = arith.addi %156, %c0_i32_68 : i32
      %158 = arith.index_cast %157 : i32 to index
      %159 = memref.load %arg1[%158] : memref<256xi32, #tpu.memory_space<smem>>
      %160 = arith.index_cast %159 : i32 to index
      %c0_69 = arith.constant 0 : index
      %161 = vector.load %arg2[%160, %c0_69] : memref<512x128xf32, #tpu.memory_space<vmem>>, vector<1x128xf32>
      %162 = arith.addf %153, %161 : vector<1x128xf32>
      %163 = arith.addi %0, %6 : i32
      %c2_i32_70 = arith.constant 2 : i32
      %164 = arith.addi %163, %c2_i32_70 : i32
      %c8_i32_71 = arith.constant 8 : i32
      %165 = arith.muli %164, %c8_i32_71 : i32
      %c1_i32_72 = arith.constant 1 : i32
      %166 = arith.addi %165, %c1_i32_72 : i32
      %167 = arith.index_cast %166 : i32 to index
      %168 = memref.load %arg1[%167] : memref<256xi32, #tpu.memory_space<smem>>
      %169 = arith.index_cast %168 : i32 to index
      %c0_73 = arith.constant 0 : index
      %170 = vector.load %arg2[%169, %c0_73] : memref<512x128xf32, #tpu.memory_space<vmem>>, vector<1x128xf32>
      %171 = arith.addf %162, %170 : vector<1x128xf32>
      %172 = arith.addi %0, %6 : i32
      %c2_i32_74 = arith.constant 2 : i32
      %173 = arith.addi %172, %c2_i32_74 : i32
      %c8_i32_75 = arith.constant 8 : i32
      %174 = arith.muli %173, %c8_i32_75 : i32
      %c2_i32_76 = arith.constant 2 : i32
      %175 = arith.addi %174, %c2_i32_76 : i32
      %176 = arith.index_cast %175 : i32 to index
      %177 = memref.load %arg1[%176] : memref<256xi32, #tpu.memory_space<smem>>
      %178 = arith.index_cast %177 : i32 to index
      %c0_77 = arith.constant 0 : index
      %179 = vector.load %arg2[%178, %c0_77] : memref<512x128xf32, #tpu.memory_space<vmem>>, vector<1x128xf32>
      %180 = arith.addf %171, %179 : vector<1x128xf32>
      %181 = arith.addi %0, %6 : i32
      %c2_i32_78 = arith.constant 2 : i32
      %182 = arith.addi %181, %c2_i32_78 : i32
      %c8_i32_79 = arith.constant 8 : i32
      %183 = arith.muli %182, %c8_i32_79 : i32
      %c3_i32_80 = arith.constant 3 : i32
      %184 = arith.addi %183, %c3_i32_80 : i32
      %185 = arith.index_cast %184 : i32 to index
      %186 = memref.load %arg1[%185] : memref<256xi32, #tpu.memory_space<smem>>
      %187 = arith.index_cast %186 : i32 to index
      %c0_81 = arith.constant 0 : index
      %188 = vector.load %arg2[%187, %c0_81] : memref<512x128xf32, #tpu.memory_space<vmem>>, vector<1x128xf32>
      %189 = arith.addf %180, %188 : vector<1x128xf32>
      %190 = arith.addi %0, %6 : i32
      %c2_i32_82 = arith.constant 2 : i32
      %191 = arith.addi %190, %c2_i32_82 : i32
      %c8_i32_83 = arith.constant 8 : i32
      %192 = arith.muli %191, %c8_i32_83 : i32
      %c4_i32_84 = arith.constant 4 : i32
      %193 = arith.addi %192, %c4_i32_84 : i32
      %194 = arith.index_cast %193 : i32 to index
      %195 = memref.load %arg1[%194] : memref<256xi32, #tpu.memory_space<smem>>
      %196 = arith.index_cast %195 : i32 to index
      %c0_85 = arith.constant 0 : index
      %197 = vector.load %arg2[%196, %c0_85] : memref<512x128xf32, #tpu.memory_space<vmem>>, vector<1x128xf32>
      %198 = arith.addf %189, %197 : vector<1x128xf32>
      %199 = arith.addi %0, %6 : i32
      %c2_i32_86 = arith.constant 2 : i32
      %200 = arith.addi %199, %c2_i32_86 : i32
      %c8_i32_87 = arith.constant 8 : i32
      %201 = arith.muli %200, %c8_i32_87 : i32
      %c5_i32_88 = arith.constant 5 : i32
      %202 = arith.addi %201, %c5_i32_88 : i32
      %203 = arith.index_cast %202 : i32 to index
      %204 = memref.load %arg1[%203] : memref<256xi32, #tpu.memory_space<smem>>
      %205 = arith.index_cast %204 : i32 to index
      %c0_89 = arith.constant 0 : index
      %206 = vector.load %arg2[%205, %c0_89] : memref<512x128xf32, #tpu.memory_space<vmem>>, vector<1x128xf32>
      %207 = arith.addf %198, %206 : vector<1x128xf32>
      %208 = arith.addi %0, %6 : i32
      %c2_i32_90 = arith.constant 2 : i32
      %209 = arith.addi %208, %c2_i32_90 : i32
      %c8_i32_91 = arith.constant 8 : i32
      %210 = arith.muli %209, %c8_i32_91 : i32
      %c6_i32_92 = arith.constant 6 : i32
      %211 = arith.addi %210, %c6_i32_92 : i32
      %212 = arith.index_cast %211 : i32 to index
      %213 = memref.load %arg1[%212] : memref<256xi32, #tpu.memory_space<smem>>
      %214 = arith.index_cast %213 : i32 to index
      %c0_93 = arith.constant 0 : index
      %215 = vector.load %arg2[%214, %c0_93] : memref<512x128xf32, #tpu.memory_space<vmem>>, vector<1x128xf32>
      %216 = arith.addf %207, %215 : vector<1x128xf32>
      %217 = arith.addi %0, %6 : i32
      %c2_i32_94 = arith.constant 2 : i32
      %218 = arith.addi %217, %c2_i32_94 : i32
      %c8_i32_95 = arith.constant 8 : i32
      %219 = arith.muli %218, %c8_i32_95 : i32
      %c7_i32_96 = arith.constant 7 : i32
      %220 = arith.addi %219, %c7_i32_96 : i32
      %221 = arith.index_cast %220 : i32 to index
      %222 = memref.load %arg1[%221] : memref<256xi32, #tpu.memory_space<smem>>
      %223 = arith.index_cast %222 : i32 to index
      %c0_97 = arith.constant 0 : index
      %224 = vector.load %arg2[%223, %c0_97] : memref<512x128xf32, #tpu.memory_space<vmem>>, vector<1x128xf32>
      %225 = arith.addf %216, %224 : vector<1x128xf32>
      %cst_98 = arith.constant 0.000000e+00 : f32
      %226 = vector.broadcast %cst_98 : f32 to vector<1x128xf32>
      %227 = arith.addi %0, %6 : i32
      %c3_i32_99 = arith.constant 3 : i32
      %228 = arith.addi %227, %c3_i32_99 : i32
      %c8_i32_100 = arith.constant 8 : i32
      %229 = arith.muli %228, %c8_i32_100 : i32
      %c0_i32_101 = arith.constant 0 : i32
      %230 = arith.addi %229, %c0_i32_101 : i32
      %231 = arith.index_cast %230 : i32 to index
      %232 = memref.load %arg1[%231] : memref<256xi32, #tpu.memory_space<smem>>
      %233 = arith.index_cast %232 : i32 to index
      %c0_102 = arith.constant 0 : index
      %234 = vector.load %arg2[%233, %c0_102] : memref<512x128xf32, #tpu.memory_space<vmem>>, vector<1x128xf32>
      %235 = arith.addf %226, %234 : vector<1x128xf32>
      %236 = arith.addi %0, %6 : i32
      %c3_i32_103 = arith.constant 3 : i32
      %237 = arith.addi %236, %c3_i32_103 : i32
      %c8_i32_104 = arith.constant 8 : i32
      %238 = arith.muli %237, %c8_i32_104 : i32
      %c1_i32_105 = arith.constant 1 : i32
      %239 = arith.addi %238, %c1_i32_105 : i32
      %240 = arith.index_cast %239 : i32 to index
      %241 = memref.load %arg1[%240] : memref<256xi32, #tpu.memory_space<smem>>
      %242 = arith.index_cast %241 : i32 to index
      %c0_106 = arith.constant 0 : index
      %243 = vector.load %arg2[%242, %c0_106] : memref<512x128xf32, #tpu.memory_space<vmem>>, vector<1x128xf32>
      %244 = arith.addf %235, %243 : vector<1x128xf32>
      %245 = arith.addi %0, %6 : i32
      %c3_i32_107 = arith.constant 3 : i32
      %246 = arith.addi %245, %c3_i32_107 : i32
      %c8_i32_108 = arith.constant 8 : i32
      %247 = arith.muli %246, %c8_i32_108 : i32
      %c2_i32_109 = arith.constant 2 : i32
      %248 = arith.addi %247, %c2_i32_109 : i32
      %249 = arith.index_cast %248 : i32 to index
      %250 = memref.load %arg1[%249] : memref<256xi32, #tpu.memory_space<smem>>
      %251 = arith.index_cast %250 : i32 to index
      %c0_110 = arith.constant 0 : index
      %252 = vector.load %arg2[%251, %c0_110] : memref<512x128xf32, #tpu.memory_space<vmem>>, vector<1x128xf32>
      %253 = arith.addf %244, %252 : vector<1x128xf32>
      %254 = arith.addi %0, %6 : i32
      %c3_i32_111 = arith.constant 3 : i32
      %255 = arith.addi %254, %c3_i32_111 : i32
      %c8_i32_112 = arith.constant 8 : i32
      %256 = arith.muli %255, %c8_i32_112 : i32
      %c3_i32_113 = arith.constant 3 : i32
      %257 = arith.addi %256, %c3_i32_113 : i32
      %258 = arith.index_cast %257 : i32 to index
      %259 = memref.load %arg1[%258] : memref<256xi32, #tpu.memory_space<smem>>
      %260 = arith.index_cast %259 : i32 to index
      %c0_114 = arith.constant 0 : index
      %261 = vector.load %arg2[%260, %c0_114] : memref<512x128xf32, #tpu.memory_space<vmem>>, vector<1x128xf32>
      %262 = arith.addf %253, %261 : vector<1x128xf32>
      %263 = arith.addi %0, %6 : i32
      %c3_i32_115 = arith.constant 3 : i32
      %264 = arith.addi %263, %c3_i32_115 : i32
      %c8_i32_116 = arith.constant 8 : i32
      %265 = arith.muli %264, %c8_i32_116 : i32
      %c4_i32_117 = arith.constant 4 : i32
      %266 = arith.addi %265, %c4_i32_117 : i32
      %267 = arith.index_cast %266 : i32 to index
      %268 = memref.load %arg1[%267] : memref<256xi32, #tpu.memory_space<smem>>
      %269 = arith.index_cast %268 : i32 to index
      %c0_118 = arith.constant 0 : index
      %270 = vector.load %arg2[%269, %c0_118] : memref<512x128xf32, #tpu.memory_space<vmem>>, vector<1x128xf32>
      %271 = arith.addf %262, %270 : vector<1x128xf32>
      %272 = arith.addi %0, %6 : i32
      %c3_i32_119 = arith.constant 3 : i32
      %273 = arith.addi %272, %c3_i32_119 : i32
      %c8_i32_120 = arith.constant 8 : i32
      %274 = arith.muli %273, %c8_i32_120 : i32
      %c5_i32_121 = arith.constant 5 : i32
      %275 = arith.addi %274, %c5_i32_121 : i32
      %276 = arith.index_cast %275 : i32 to index
      %277 = memref.load %arg1[%276] : memref<256xi32, #tpu.memory_space<smem>>
      %278 = arith.index_cast %277 : i32 to index
      %c0_122 = arith.constant 0 : index
      %279 = vector.load %arg2[%278, %c0_122] : memref<512x128xf32, #tpu.memory_space<vmem>>, vector<1x128xf32>
      %280 = arith.addf %271, %279 : vector<1x128xf32>
      %281 = arith.addi %0, %6 : i32
      %c3_i32_123 = arith.constant 3 : i32
      %282 = arith.addi %281, %c3_i32_123 : i32
      %c8_i32_124 = arith.constant 8 : i32
      %283 = arith.muli %282, %c8_i32_124 : i32
      %c6_i32_125 = arith.constant 6 : i32
      %284 = arith.addi %283, %c6_i32_125 : i32
      %285 = arith.index_cast %284 : i32 to index
      %286 = memref.load %arg1[%285] : memref<256xi32, #tpu.memory_space<smem>>
      %287 = arith.index_cast %286 : i32 to index
      %c0_126 = arith.constant 0 : index
      %288 = vector.load %arg2[%287, %c0_126] : memref<512x128xf32, #tpu.memory_space<vmem>>, vector<1x128xf32>
      %289 = arith.addf %280, %288 : vector<1x128xf32>
      %290 = arith.addi %0, %6 : i32
      %c3_i32_127 = arith.constant 3 : i32
      %291 = arith.addi %290, %c3_i32_127 : i32
      %c8_i32_128 = arith.constant 8 : i32
      %292 = arith.muli %291, %c8_i32_128 : i32
      %c7_i32_129 = arith.constant 7 : i32
      %293 = arith.addi %292, %c7_i32_129 : i32
      %294 = arith.index_cast %293 : i32 to index
      %295 = memref.load %arg1[%294] : memref<256xi32, #tpu.memory_space<smem>>
      %296 = arith.index_cast %295 : i32 to index
      %c0_130 = arith.constant 0 : index
      %297 = vector.load %arg2[%296, %c0_130] : memref<512x128xf32, #tpu.memory_space<vmem>>, vector<1x128xf32>
      %298 = arith.addf %289, %297 : vector<1x128xf32>
      %cst_131 = arith.constant 0.000000e+00 : f32
      %299 = vector.broadcast %cst_131 : f32 to vector<1x128xf32>
      %300 = arith.addi %0, %6 : i32
      %c4_i32_132 = arith.constant 4 : i32
      %301 = arith.addi %300, %c4_i32_132 : i32
      %c8_i32_133 = arith.constant 8 : i32
      %302 = arith.muli %301, %c8_i32_133 : i32
      %c0_i32_134 = arith.constant 0 : i32
      %303 = arith.addi %302, %c0_i32_134 : i32
      %304 = arith.index_cast %303 : i32 to index
      %305 = memref.load %arg1[%304] : memref<256xi32, #tpu.memory_space<smem>>
      %306 = arith.index_cast %305 : i32 to index
      %c0_135 = arith.constant 0 : index
      %307 = vector.load %arg2[%306, %c0_135] : memref<512x128xf32, #tpu.memory_space<vmem>>, vector<1x128xf32>
      %308 = arith.addf %299, %307 : vector<1x128xf32>
      %309 = arith.addi %0, %6 : i32
      %c4_i32_136 = arith.constant 4 : i32
      %310 = arith.addi %309, %c4_i32_136 : i32
      %c8_i32_137 = arith.constant 8 : i32
      %311 = arith.muli %310, %c8_i32_137 : i32
      %c1_i32_138 = arith.constant 1 : i32
      %312 = arith.addi %311, %c1_i32_138 : i32
      %313 = arith.index_cast %312 : i32 to index
      %314 = memref.load %arg1[%313] : memref<256xi32, #tpu.memory_space<smem>>
      %315 = arith.index_cast %314 : i32 to index
      %c0_139 = arith.constant 0 : index
      %316 = vector.load %arg2[%315, %c0_139] : memref<512x128xf32, #tpu.memory_space<vmem>>, vector<1x128xf32>
      %317 = arith.addf %308, %316 : vector<1x128xf32>
      %318 = arith.addi %0, %6 : i32
      %c4_i32_140 = arith.constant 4 : i32
      %319 = arith.addi %318, %c4_i32_140 : i32
      %c8_i32_141 = arith.constant 8 : i32
      %320 = arith.muli %319, %c8_i32_141 : i32
      %c2_i32_142 = arith.constant 2 : i32
      %321 = arith.addi %320, %c2_i32_142 : i32
      %322 = arith.index_cast %321 : i32 to index
      %323 = memref.load %arg1[%322] : memref<256xi32, #tpu.memory_space<smem>>
      %324 = arith.index_cast %323 : i32 to index
      %c0_143 = arith.constant 0 : index
      %325 = vector.load %arg2[%324, %c0_143] : memref<512x128xf32, #tpu.memory_space<vmem>>, vector<1x128xf32>
      %326 = arith.addf %317, %325 : vector<1x128xf32>
      %327 = arith.addi %0, %6 : i32
      %c4_i32_144 = arith.constant 4 : i32
      %328 = arith.addi %327, %c4_i32_144 : i32
      %c8_i32_145 = arith.constant 8 : i32
      %329 = arith.muli %328, %c8_i32_145 : i32
      %c3_i32_146 = arith.constant 3 : i32
      %330 = arith.addi %329, %c3_i32_146 : i32
      %331 = arith.index_cast %330 : i32 to index
      %332 = memref.load %arg1[%331] : memref<256xi32, #tpu.memory_space<smem>>
      %333 = arith.index_cast %332 : i32 to index
      %c0_147 = arith.constant 0 : index
      %334 = vector.load %arg2[%333, %c0_147] : memref<512x128xf32, #tpu.memory_space<vmem>>, vector<1x128xf32>
      %335 = arith.addf %326, %334 : vector<1x128xf32>
      %336 = arith.addi %0, %6 : i32
      %c4_i32_148 = arith.constant 4 : i32
      %337 = arith.addi %336, %c4_i32_148 : i32
      %c8_i32_149 = arith.constant 8 : i32
      %338 = arith.muli %337, %c8_i32_149 : i32
      %c4_i32_150 = arith.constant 4 : i32
      %339 = arith.addi %338, %c4_i32_150 : i32
      %340 = arith.index_cast %339 : i32 to index
      %341 = memref.load %arg1[%340] : memref<256xi32, #tpu.memory_space<smem>>
      %342 = arith.index_cast %341 : i32 to index
      %c0_151 = arith.constant 0 : index
      %343 = vector.load %arg2[%342, %c0_151] : memref<512x128xf32, #tpu.memory_space<vmem>>, vector<1x128xf32>
      %344 = arith.addf %335, %343 : vector<1x128xf32>
      %345 = arith.addi %0, %6 : i32
      %c4_i32_152 = arith.constant 4 : i32
      %346 = arith.addi %345, %c4_i32_152 : i32
      %c8_i32_153 = arith.constant 8 : i32
      %347 = arith.muli %346, %c8_i32_153 : i32
      %c5_i32_154 = arith.constant 5 : i32
      %348 = arith.addi %347, %c5_i32_154 : i32
      %349 = arith.index_cast %348 : i32 to index
      %350 = memref.load %arg1[%349] : memref<256xi32, #tpu.memory_space<smem>>
      %351 = arith.index_cast %350 : i32 to index
      %c0_155 = arith.constant 0 : index
      %352 = vector.load %arg2[%351, %c0_155] : memref<512x128xf32, #tpu.memory_space<vmem>>, vector<1x128xf32>
      %353 = arith.addf %344, %352 : vector<1x128xf32>
      %354 = arith.addi %0, %6 : i32
      %c4_i32_156 = arith.constant 4 : i32
      %355 = arith.addi %354, %c4_i32_156 : i32
      %c8_i32_157 = arith.constant 8 : i32
      %356 = arith.muli %355, %c8_i32_157 : i32
      %c6_i32_158 = arith.constant 6 : i32
      %357 = arith.addi %356, %c6_i32_158 : i32
      %358 = arith.index_cast %357 : i32 to index
      %359 = memref.load %arg1[%358] : memref<256xi32, #tpu.memory_space<smem>>
      %360 = arith.index_cast %359 : i32 to index
      %c0_159 = arith.constant 0 : index
      %361 = vector.load %arg2[%360, %c0_159] : memref<512x128xf32, #tpu.memory_space<vmem>>, vector<1x128xf32>
      %362 = arith.addf %353, %361 : vector<1x128xf32>
      %363 = arith.addi %0, %6 : i32
      %c4_i32_160 = arith.constant 4 : i32
      %364 = arith.addi %363, %c4_i32_160 : i32
      %c8_i32_161 = arith.constant 8 : i32
      %365 = arith.muli %364, %c8_i32_161 : i32
      %c7_i32_162 = arith.constant 7 : i32
      %366 = arith.addi %365, %c7_i32_162 : i32
      %367 = arith.index_cast %366 : i32 to index
      %368 = memref.load %arg1[%367] : memref<256xi32, #tpu.memory_space<smem>>
      %369 = arith.index_cast %368 : i32 to index
      %c0_163 = arith.constant 0 : index
      %370 = vector.load %arg2[%369, %c0_163] : memref<512x128xf32, #tpu.memory_space<vmem>>, vector<1x128xf32>
      %371 = arith.addf %362, %370 : vector<1x128xf32>
      %cst_164 = arith.constant 0.000000e+00 : f32
      %372 = vector.broadcast %cst_164 : f32 to vector<1x128xf32>
      %373 = arith.addi %0, %6 : i32
      %c5_i32_165 = arith.constant 5 : i32
      %374 = arith.addi %373, %c5_i32_165 : i32
      %c8_i32_166 = arith.constant 8 : i32
      %375 = arith.muli %374, %c8_i32_166 : i32
      %c0_i32_167 = arith.constant 0 : i32
      %376 = arith.addi %375, %c0_i32_167 : i32
      %377 = arith.index_cast %376 : i32 to index
      %378 = memref.load %arg1[%377] : memref<256xi32, #tpu.memory_space<smem>>
      %379 = arith.index_cast %378 : i32 to index
      %c0_168 = arith.constant 0 : index
      %380 = vector.load %arg2[%379, %c0_168] : memref<512x128xf32, #tpu.memory_space<vmem>>, vector<1x128xf32>
      %381 = arith.addf %372, %380 : vector<1x128xf32>
      %382 = arith.addi %0, %6 : i32
      %c5_i32_169 = arith.constant 5 : i32
      %383 = arith.addi %382, %c5_i32_169 : i32
      %c8_i32_170 = arith.constant 8 : i32
      %384 = arith.muli %383, %c8_i32_170 : i32
      %c1_i32_171 = arith.constant 1 : i32
      %385 = arith.addi %384, %c1_i32_171 : i32
      %386 = arith.index_cast %385 : i32 to index
      %387 = memref.load %arg1[%386] : memref<256xi32, #tpu.memory_space<smem>>
      %388 = arith.index_cast %387 : i32 to index
      %c0_172 = arith.constant 0 : index
      %389 = vector.load %arg2[%388, %c0_172] : memref<512x128xf32, #tpu.memory_space<vmem>>, vector<1x128xf32>
      %390 = arith.addf %381, %389 : vector<1x128xf32>
      %391 = arith.addi %0, %6 : i32
      %c5_i32_173 = arith.constant 5 : i32
      %392 = arith.addi %391, %c5_i32_173 : i32
      %c8_i32_174 = arith.constant 8 : i32
      %393 = arith.muli %392, %c8_i32_174 : i32
      %c2_i32_175 = arith.constant 2 : i32
      %394 = arith.addi %393, %c2_i32_175 : i32
      %395 = arith.index_cast %394 : i32 to index
      %396 = memref.load %arg1[%395] : memref<256xi32, #tpu.memory_space<smem>>
      %397 = arith.index_cast %396 : i32 to index
      %c0_176 = arith.constant 0 : index
      %398 = vector.load %arg2[%397, %c0_176] : memref<512x128xf32, #tpu.memory_space<vmem>>, vector<1x128xf32>
      %399 = arith.addf %390, %398 : vector<1x128xf32>
      %400 = arith.addi %0, %6 : i32
      %c5_i32_177 = arith.constant 5 : i32
      %401 = arith.addi %400, %c5_i32_177 : i32
      %c8_i32_178 = arith.constant 8 : i32
      %402 = arith.muli %401, %c8_i32_178 : i32
      %c3_i32_179 = arith.constant 3 : i32
      %403 = arith.addi %402, %c3_i32_179 : i32
      %404 = arith.index_cast %403 : i32 to index
      %405 = memref.load %arg1[%404] : memref<256xi32, #tpu.memory_space<smem>>
      %406 = arith.index_cast %405 : i32 to index
      %c0_180 = arith.constant 0 : index
      %407 = vector.load %arg2[%406, %c0_180] : memref<512x128xf32, #tpu.memory_space<vmem>>, vector<1x128xf32>
      %408 = arith.addf %399, %407 : vector<1x128xf32>
      %409 = arith.addi %0, %6 : i32
      %c5_i32_181 = arith.constant 5 : i32
      %410 = arith.addi %409, %c5_i32_181 : i32
      %c8_i32_182 = arith.constant 8 : i32
      %411 = arith.muli %410, %c8_i32_182 : i32
      %c4_i32_183 = arith.constant 4 : i32
      %412 = arith.addi %411, %c4_i32_183 : i32
      %413 = arith.index_cast %412 : i32 to index
      %414 = memref.load %arg1[%413] : memref<256xi32, #tpu.memory_space<smem>>
      %415 = arith.index_cast %414 : i32 to index
      %c0_184 = arith.constant 0 : index
      %416 = vector.load %arg2[%415, %c0_184] : memref<512x128xf32, #tpu.memory_space<vmem>>, vector<1x128xf32>
      %417 = arith.addf %408, %416 : vector<1x128xf32>
      %418 = arith.addi %0, %6 : i32
      %c5_i32_185 = arith.constant 5 : i32
      %419 = arith.addi %418, %c5_i32_185 : i32
      %c8_i32_186 = arith.constant 8 : i32
      %420 = arith.muli %419, %c8_i32_186 : i32
      %c5_i32_187 = arith.constant 5 : i32
      %421 = arith.addi %420, %c5_i32_187 : i32
      %422 = arith.index_cast %421 : i32 to index
      %423 = memref.load %arg1[%422] : memref<256xi32, #tpu.memory_space<smem>>
      %424 = arith.index_cast %423 : i32 to index
      %c0_188 = arith.constant 0 : index
      %425 = vector.load %arg2[%424, %c0_188] : memref<512x128xf32, #tpu.memory_space<vmem>>, vector<1x128xf32>
      %426 = arith.addf %417, %425 : vector<1x128xf32>
      %427 = arith.addi %0, %6 : i32
      %c5_i32_189 = arith.constant 5 : i32
      %428 = arith.addi %427, %c5_i32_189 : i32
      %c8_i32_190 = arith.constant 8 : i32
      %429 = arith.muli %428, %c8_i32_190 : i32
      %c6_i32_191 = arith.constant 6 : i32
      %430 = arith.addi %429, %c6_i32_191 : i32
      %431 = arith.index_cast %430 : i32 to index
      %432 = memref.load %arg1[%431] : memref<256xi32, #tpu.memory_space<smem>>
      %433 = arith.index_cast %432 : i32 to index
      %c0_192 = arith.constant 0 : index
      %434 = vector.load %arg2[%433, %c0_192] : memref<512x128xf32, #tpu.memory_space<vmem>>, vector<1x128xf32>
      %435 = arith.addf %426, %434 : vector<1x128xf32>
      %436 = arith.addi %0, %6 : i32
      %c5_i32_193 = arith.constant 5 : i32
      %437 = arith.addi %436, %c5_i32_193 : i32
      %c8_i32_194 = arith.constant 8 : i32
      %438 = arith.muli %437, %c8_i32_194 : i32
      %c7_i32_195 = arith.constant 7 : i32
      %439 = arith.addi %438, %c7_i32_195 : i32
      %440 = arith.index_cast %439 : i32 to index
      %441 = memref.load %arg1[%440] : memref<256xi32, #tpu.memory_space<smem>>
      %442 = arith.index_cast %441 : i32 to index
      %c0_196 = arith.constant 0 : index
      %443 = vector.load %arg2[%442, %c0_196] : memref<512x128xf32, #tpu.memory_space<vmem>>, vector<1x128xf32>
      %444 = arith.addf %435, %443 : vector<1x128xf32>
      %cst_197 = arith.constant 0.000000e+00 : f32
      %445 = vector.broadcast %cst_197 : f32 to vector<1x128xf32>
      %446 = arith.addi %0, %6 : i32
      %c6_i32_198 = arith.constant 6 : i32
      %447 = arith.addi %446, %c6_i32_198 : i32
      %c8_i32_199 = arith.constant 8 : i32
      %448 = arith.muli %447, %c8_i32_199 : i32
      %c0_i32_200 = arith.constant 0 : i32
      %449 = arith.addi %448, %c0_i32_200 : i32
      %450 = arith.index_cast %449 : i32 to index
      %451 = memref.load %arg1[%450] : memref<256xi32, #tpu.memory_space<smem>>
      %452 = arith.index_cast %451 : i32 to index
      %c0_201 = arith.constant 0 : index
      %453 = vector.load %arg2[%452, %c0_201] : memref<512x128xf32, #tpu.memory_space<vmem>>, vector<1x128xf32>
      %454 = arith.addf %445, %453 : vector<1x128xf32>
      %455 = arith.addi %0, %6 : i32
      %c6_i32_202 = arith.constant 6 : i32
      %456 = arith.addi %455, %c6_i32_202 : i32
      %c8_i32_203 = arith.constant 8 : i32
      %457 = arith.muli %456, %c8_i32_203 : i32
      %c1_i32_204 = arith.constant 1 : i32
      %458 = arith.addi %457, %c1_i32_204 : i32
      %459 = arith.index_cast %458 : i32 to index
      %460 = memref.load %arg1[%459] : memref<256xi32, #tpu.memory_space<smem>>
      %461 = arith.index_cast %460 : i32 to index
      %c0_205 = arith.constant 0 : index
      %462 = vector.load %arg2[%461, %c0_205] : memref<512x128xf32, #tpu.memory_space<vmem>>, vector<1x128xf32>
      %463 = arith.addf %454, %462 : vector<1x128xf32>
      %464 = arith.addi %0, %6 : i32
      %c6_i32_206 = arith.constant 6 : i32
      %465 = arith.addi %464, %c6_i32_206 : i32
      %c8_i32_207 = arith.constant 8 : i32
      %466 = arith.muli %465, %c8_i32_207 : i32
      %c2_i32_208 = arith.constant 2 : i32
      %467 = arith.addi %466, %c2_i32_208 : i32
      %468 = arith.index_cast %467 : i32 to index
      %469 = memref.load %arg1[%468] : memref<256xi32, #tpu.memory_space<smem>>
      %470 = arith.index_cast %469 : i32 to index
      %c0_209 = arith.constant 0 : index
      %471 = vector.load %arg2[%470, %c0_209] : memref<512x128xf32, #tpu.memory_space<vmem>>, vector<1x128xf32>
      %472 = arith.addf %463, %471 : vector<1x128xf32>
      %473 = arith.addi %0, %6 : i32
      %c6_i32_210 = arith.constant 6 : i32
      %474 = arith.addi %473, %c6_i32_210 : i32
      %c8_i32_211 = arith.constant 8 : i32
      %475 = arith.muli %474, %c8_i32_211 : i32
      %c3_i32_212 = arith.constant 3 : i32
      %476 = arith.addi %475, %c3_i32_212 : i32
      %477 = arith.index_cast %476 : i32 to index
      %478 = memref.load %arg1[%477] : memref<256xi32, #tpu.memory_space<smem>>
      %479 = arith.index_cast %478 : i32 to index
      %c0_213 = arith.constant 0 : index
      %480 = vector.load %arg2[%479, %c0_213] : memref<512x128xf32, #tpu.memory_space<vmem>>, vector<1x128xf32>
      %481 = arith.addf %472, %480 : vector<1x128xf32>
      %482 = arith.addi %0, %6 : i32
      %c6_i32_214 = arith.constant 6 : i32
      %483 = arith.addi %482, %c6_i32_214 : i32
      %c8_i32_215 = arith.constant 8 : i32
      %484 = arith.muli %483, %c8_i32_215 : i32
      %c4_i32_216 = arith.constant 4 : i32
      %485 = arith.addi %484, %c4_i32_216 : i32
      %486 = arith.index_cast %485 : i32 to index
      %487 = memref.load %arg1[%486] : memref<256xi32, #tpu.memory_space<smem>>
      %488 = arith.index_cast %487 : i32 to index
      %c0_217 = arith.constant 0 : index
      %489 = vector.load %arg2[%488, %c0_217] : memref<512x128xf32, #tpu.memory_space<vmem>>, vector<1x128xf32>
      %490 = arith.addf %481, %489 : vector<1x128xf32>
      %491 = arith.addi %0, %6 : i32
      %c6_i32_218 = arith.constant 6 : i32
      %492 = arith.addi %491, %c6_i32_218 : i32
      %c8_i32_219 = arith.constant 8 : i32
      %493 = arith.muli %492, %c8_i32_219 : i32
      %c5_i32_220 = arith.constant 5 : i32
      %494 = arith.addi %493, %c5_i32_220 : i32
      %495 = arith.index_cast %494 : i32 to index
      %496 = memref.load %arg1[%495] : memref<256xi32, #tpu.memory_space<smem>>
      %497 = arith.index_cast %496 : i32 to index
      %c0_221 = arith.constant 0 : index
      %498 = vector.load %arg2[%497, %c0_221] : memref<512x128xf32, #tpu.memory_space<vmem>>, vector<1x128xf32>
      %499 = arith.addf %490, %498 : vector<1x128xf32>
      %500 = arith.addi %0, %6 : i32
      %c6_i32_222 = arith.constant 6 : i32
      %501 = arith.addi %500, %c6_i32_222 : i32
      %c8_i32_223 = arith.constant 8 : i32
      %502 = arith.muli %501, %c8_i32_223 : i32
      %c6_i32_224 = arith.constant 6 : i32
      %503 = arith.addi %502, %c6_i32_224 : i32
      %504 = arith.index_cast %503 : i32 to index
      %505 = memref.load %arg1[%504] : memref<256xi32, #tpu.memory_space<smem>>
      %506 = arith.index_cast %505 : i32 to index
      %c0_225 = arith.constant 0 : index
      %507 = vector.load %arg2[%506, %c0_225] : memref<512x128xf32, #tpu.memory_space<vmem>>, vector<1x128xf32>
      %508 = arith.addf %499, %507 : vector<1x128xf32>
      %509 = arith.addi %0, %6 : i32
      %c6_i32_226 = arith.constant 6 : i32
      %510 = arith.addi %509, %c6_i32_226 : i32
      %c8_i32_227 = arith.constant 8 : i32
      %511 = arith.muli %510, %c8_i32_227 : i32
      %c7_i32_228 = arith.constant 7 : i32
      %512 = arith.addi %511, %c7_i32_228 : i32
      %513 = arith.index_cast %512 : i32 to index
      %514 = memref.load %arg1[%513] : memref<256xi32, #tpu.memory_space<smem>>
      %515 = arith.index_cast %514 : i32 to index
      %c0_229 = arith.constant 0 : index
      %516 = vector.load %arg2[%515, %c0_229] : memref<512x128xf32, #tpu.memory_space<vmem>>, vector<1x128xf32>
      %517 = arith.addf %508, %516 : vector<1x128xf32>
      %cst_230 = arith.constant 0.000000e+00 : f32
      %518 = vector.broadcast %cst_230 : f32 to vector<1x128xf32>
      %519 = arith.addi %0, %6 : i32
      %c7_i32_231 = arith.constant 7 : i32
      %520 = arith.addi %519, %c7_i32_231 : i32
      %c8_i32_232 = arith.constant 8 : i32
      %521 = arith.muli %520, %c8_i32_232 : i32
      %c0_i32_233 = arith.constant 0 : i32
      %522 = arith.addi %521, %c0_i32_233 : i32
      %523 = arith.index_cast %522 : i32 to index
      %524 = memref.load %arg1[%523] : memref<256xi32, #tpu.memory_space<smem>>
      %525 = arith.index_cast %524 : i32 to index
      %c0_234 = arith.constant 0 : index
      %526 = vector.load %arg2[%525, %c0_234] : memref<512x128xf32, #tpu.memory_space<vmem>>, vector<1x128xf32>
      %527 = arith.addf %518, %526 : vector<1x128xf32>
      %528 = arith.addi %0, %6 : i32
      %c7_i32_235 = arith.constant 7 : i32
      %529 = arith.addi %528, %c7_i32_235 : i32
      %c8_i32_236 = arith.constant 8 : i32
      %530 = arith.muli %529, %c8_i32_236 : i32
      %c1_i32_237 = arith.constant 1 : i32
      %531 = arith.addi %530, %c1_i32_237 : i32
      %532 = arith.index_cast %531 : i32 to index
      %533 = memref.load %arg1[%532] : memref<256xi32, #tpu.memory_space<smem>>
      %534 = arith.index_cast %533 : i32 to index
      %c0_238 = arith.constant 0 : index
      %535 = vector.load %arg2[%534, %c0_238] : memref<512x128xf32, #tpu.memory_space<vmem>>, vector<1x128xf32>
      %536 = arith.addf %527, %535 : vector<1x128xf32>
      %537 = arith.addi %0, %6 : i32
      %c7_i32_239 = arith.constant 7 : i32
      %538 = arith.addi %537, %c7_i32_239 : i32
      %c8_i32_240 = arith.constant 8 : i32
      %539 = arith.muli %538, %c8_i32_240 : i32
      %c2_i32_241 = arith.constant 2 : i32
      %540 = arith.addi %539, %c2_i32_241 : i32
      %541 = arith.index_cast %540 : i32 to index
      %542 = memref.load %arg1[%541] : memref<256xi32, #tpu.memory_space<smem>>
      %543 = arith.index_cast %542 : i32 to index
      %c0_242 = arith.constant 0 : index
      %544 = vector.load %arg2[%543, %c0_242] : memref<512x128xf32, #tpu.memory_space<vmem>>, vector<1x128xf32>
      %545 = arith.addf %536, %544 : vector<1x128xf32>
      %546 = arith.addi %0, %6 : i32
      %c7_i32_243 = arith.constant 7 : i32
      %547 = arith.addi %546, %c7_i32_243 : i32
      %c8_i32_244 = arith.constant 8 : i32
      %548 = arith.muli %547, %c8_i32_244 : i32
      %c3_i32_245 = arith.constant 3 : i32
      %549 = arith.addi %548, %c3_i32_245 : i32
      %550 = arith.index_cast %549 : i32 to index
      %551 = memref.load %arg1[%550] : memref<256xi32, #tpu.memory_space<smem>>
      %552 = arith.index_cast %551 : i32 to index
      %c0_246 = arith.constant 0 : index
      %553 = vector.load %arg2[%552, %c0_246] : memref<512x128xf32, #tpu.memory_space<vmem>>, vector<1x128xf32>
      %554 = arith.addf %545, %553 : vector<1x128xf32>
      %555 = arith.addi %0, %6 : i32
      %c7_i32_247 = arith.constant 7 : i32
      %556 = arith.addi %555, %c7_i32_247 : i32
      %c8_i32_248 = arith.constant 8 : i32
      %557 = arith.muli %556, %c8_i32_248 : i32
      %c4_i32_249 = arith.constant 4 : i32
      %558 = arith.addi %557, %c4_i32_249 : i32
      %559 = arith.index_cast %558 : i32 to index
      %560 = memref.load %arg1[%559] : memref<256xi32, #tpu.memory_space<smem>>
      %561 = arith.index_cast %560 : i32 to index
      %c0_250 = arith.constant 0 : index
      %562 = vector.load %arg2[%561, %c0_250] : memref<512x128xf32, #tpu.memory_space<vmem>>, vector<1x128xf32>
      %563 = arith.addf %554, %562 : vector<1x128xf32>
      %564 = arith.addi %0, %6 : i32
      %c7_i32_251 = arith.constant 7 : i32
      %565 = arith.addi %564, %c7_i32_251 : i32
      %c8_i32_252 = arith.constant 8 : i32
      %566 = arith.muli %565, %c8_i32_252 : i32
      %c5_i32_253 = arith.constant 5 : i32
      %567 = arith.addi %566, %c5_i32_253 : i32
      %568 = arith.index_cast %567 : i32 to index
      %569 = memref.load %arg1[%568] : memref<256xi32, #tpu.memory_space<smem>>
      %570 = arith.index_cast %569 : i32 to index
      %c0_254 = arith.constant 0 : index
      %571 = vector.load %arg2[%570, %c0_254] : memref<512x128xf32, #tpu.memory_space<vmem>>, vector<1x128xf32>
      %572 = arith.addf %563, %571 : vector<1x128xf32>
      %573 = arith.addi %0, %6 : i32
      %c7_i32_255 = arith.constant 7 : i32
      %574 = arith.addi %573, %c7_i32_255 : i32
      %c8_i32_256 = arith.constant 8 : i32
      %575 = arith.muli %574, %c8_i32_256 : i32
      %c6_i32_257 = arith.constant 6 : i32
      %576 = arith.addi %575, %c6_i32_257 : i32
      %577 = arith.index_cast %576 : i32 to index
      %578 = memref.load %arg1[%577] : memref<256xi32, #tpu.memory_space<smem>>
      %579 = arith.index_cast %578 : i32 to index
      %c0_258 = arith.constant 0 : index
      %580 = vector.load %arg2[%579, %c0_258] : memref<512x128xf32, #tpu.memory_space<vmem>>, vector<1x128xf32>
      %581 = arith.addf %572, %580 : vector<1x128xf32>
      %582 = arith.addi %0, %6 : i32
      %c7_i32_259 = arith.constant 7 : i32
      %583 = arith.addi %582, %c7_i32_259 : i32
      %c8_i32_260 = arith.constant 8 : i32
      %584 = arith.muli %583, %c8_i32_260 : i32
      %c7_i32_261 = arith.constant 7 : i32
      %585 = arith.addi %584, %c7_i32_261 : i32
      %586 = arith.index_cast %585 : i32 to index
      %587 = memref.load %arg1[%586] : memref<256xi32, #tpu.memory_space<smem>>
      %588 = arith.index_cast %587 : i32 to index
      %c0_262 = arith.constant 0 : index
      %589 = vector.load %arg2[%588, %c0_262] : memref<512x128xf32, #tpu.memory_space<vmem>>, vector<1x128xf32>
      %590 = arith.addf %581, %589 : vector<1x128xf32>
      %591 = tpu.concatenate %79, %152, %225, %298, %371, %444, %517, %590 in 0 : vector<1x128xf32>, vector<1x128xf32>, vector<1x128xf32>, vector<1x128xf32>, vector<1x128xf32>, vector<1x128xf32>, vector<1x128xf32>, vector<1x128xf32> -> vector<8x128xf32>
      %592 = vector.broadcast %cst : f32 to vector<8x128xf32>
      %593 = arith.mulf %591, %592 : vector<8x128xf32>
      %594 = arith.index_cast %6 : i32 to index
      %c0_263 = arith.constant 0 : index
      %595 = vector.load %arg4[%594, %c0_263] : memref<16x128xf32, #tpu.memory_space<vmem>>, vector<8x128xf32>
      tpu.vector_store %arg4[%594, %c0_263], %593 {strides = array<i32>} : memref<16x128xf32, #tpu.memory_space<vmem>>, vector<8x128xf32>,
    }
    %c2_i32_0 = arith.constant 2 : i32
    %c0 = arith.constant 0 : index
    %c0_1 = arith.constant 0 : index
    %2 = vector.load %arg4[%c0, %c0_1] : memref<16x128xf32, #tpu.memory_space<vmem>>, vector<16x128xf32>
    %3 = arith.truncf %2 : vector<16x128xf32> to vector<16x128xbf16>
    %c0_2 = arith.constant 0 : index
    %c0_3 = arith.constant 0 : index
    %4 = vector.load %arg3[%c0_2, %c0_3] : memref<16x128xbf16, #tpu.memory_space<vmem>>, vector<16x128xbf16>
    tpu.vector_store %arg3[%c0_2, %c0_3], %3 {strides = array<i32>} : memref<16x128xbf16, #tpu.memory_space<vmem>>, vector<16x128xbf16>,
    return
  }
  func.func @transform_0(%arg0: i32, %arg1: memref<256xi32, #tpu.memory_space<smem>>) -> (i32, i32) {
    %c0_i32 = arith.constant 0 : i32
    %c0_i32_0 = arith.constant 0 : i32
    %c0_i32_1 = arith.constant 0 : i32
    return %c0_i32, %c0_i32_0 : i32, i32
  }
  func.func @transform_1(%arg0: i32, %arg1: memref<256xi32, #tpu.memory_space<smem>>) -> (i32, i32) {
    %c0_i32 = arith.constant 0 : i32
    %c0_i32_0 = arith.constant 0 : i32
    return %arg0, %c0_i32 : i32, i32
  }
}

</mosaic_0001>

<llo_original>
// kernel: tpu_custom_call.1
$region0: #{tpu_custom_call.1}
  #allocation0 [shape = 'u32[]', space=smem, size = 0x4, offset = 0x4, fixed_abs, tag = 'smem constant byte address 0x4 - core index']
  #allocation1 [shape = 'u32[144,128]{1,0:T(1,128)}', space=vmem, size = 0x12000, scoped, tag = 'internal scratch']
  #allocation2 [shape = 'f32[16,128]{1,0:T(8,128)}', space=vmem, size = 0x2000, scoped, tag = 'scratch operand']
  #allocation3 [shape = 's32[1]{0}', space=sflag, size = 0x4, scoped, tag = 'scoped memory for tpu_custom_call.1']
  #allocation4 [shape = 'u8[1024]{0}', space=smem, size = 0x400, scoped, tag = 'prefetched SMEM operand 0']
  %s0 = inlined_call_operand.hbm [shape: s32[256], index: 0, kind: input, shape index: {}]
  %s1 = inlined_call_operand.hbm [shape: f32[512,128], index: 1, kind: input, shape index: {}]
  %s2 = inlined_call_operand.hbm [shape: bf16[32,128], index: 2, kind: output, shape index: {}]
  %s3 = sld [smem:[#allocation0]]
  $region48: #{tpu_custom_call.1} parent=0
    _
  %s5 = ssub.s32 1, %s3
  %s6 = scalar_select 0, %s5, %s3
  %8 = dma.hbm_to_smem %s0, 32, [#allocation4], [#allocation3]
  %9 = dma.done [#allocation3], 32
  %10 = sfence
  $region1: #{tpu_custom_call.1} parent=0
    #allocation5 [shape = 'u8[262144]{0}', space=vmem, size = 0x40000, scoped, tag = 'input window, operand 1, single buffered']
    #allocation6 [shape = 's32[2]{0}', space=sflag, size = 0x8, scoped, tag = 'scoped memory for tpu_custom_call.1']
    #allocation7 [shape = 's32[2]{0}', space=sflag, size = 0x8, scoped, tag = 'scoped memory for tpu_custom_call.1']
    #allocation8 [shape = 'u8[8192]{0}', space=vmem, size = 0x2000, scoped, tag = 'output window, operand 0']
    %11 = vsyncpa [#allocation6], 0
    %12 = vsyncpa [#allocation7], 0
    %s13 = scalar_lea.sflag [#allocation7], 1
    %14 = vsyncpa %s13, 0
    loop: start=0, step=1, limit=4
    $region2: #{tpu_custom_call.1} parent=1 // loop_pre_header
      _
    $region3: #{tpu_custom_call.1} parent=1 // loop_header
      %s16 = sphi 0, %s20
      %p17 = scmp.ge.s32.totalorder %s16, 4
      %s24 = sphi 0, %s24
      %s26 = sphi 0, %s24
      %s27 = sphi 0, %s26
      %s41 = sphi 0, %s27
      %s47 = sphi 0, %s49
      %s50 = sphi 0, %s47
      %s51 = sphi 0, %s50
      %s67 = sphi 0, %s51
    $region4: #{tpu_custom_call.1} parent=1 // loop_header_branch
      %19 = sbr.rel (%p17) target = $region8
    $region5: #{tpu_custom_call.1} parent=1 // loop_body
      %s21 = ssub.s32 %s16, 1
      %s22 = ssub.s32 %s16, 2
      %s23 = sadd.s32 %s16, 1
      %s25 = sadd.s32 %s24, 1
      %p28 = scmp.eq.s32.totalorder %s16, 1
      %p29 = scmp.ne.s32.totalorder %s24, %s26
      %p30 = scmp.eq.s32.totalorder %s16, 0
      %p31 = por %p29, %p30
      %p32 = scmp.ne.s32.totalorder %s24, %s26
      %p33 = scmp.eq.s32.totalorder %s21, 1
      %p34 = por %p32, %p33
      %p35 = scmp.ne.s32.totalorder %s26, %s27
      %p36 = scmp.eq.s32.totalorder %s21, 0
      %p37 = por %p35, %p36
      %p38 = scmp.ne.s32.totalorder %s26, %s27
      %p39 = scmp.eq.s32.totalorder %s22, 1
      %p40 = por %p38, %p39
      %p42 = scmp.ne.s32.totalorder %s27, %s41
      %p43 = scmp.eq.s32.totalorder %s22, 0
      %p44 = por %p42, %p43
      %s45 = ssub.s32 %s16, %s23
      %p46 = scmp.eq.s32.totalorder %s45, 0
      %s48 = sadd.s32 %s47, 1
      %s49 = scalar_select %p46, %s47, %s48
      %p52 = pneg %p46
      %p53 = scmp.eq.s32.totalorder %s16, 1
      %p54 = por %p52, %p53
      %p55 = scmp.ne.s32.totalorder %s47, %s50
      %p56 = scmp.eq.s32.totalorder %s16, 0
      %p57 = por %p55, %p56
      %p58 = scmp.ne.s32.totalorder %s47, %s50
      %p59 = scmp.eq.s32.totalorder %s21, 1
      %p60 = por %p58, %p59
      %p61 = scmp.ne.s32.totalorder %s50, %s51
      %p62 = scmp.eq.s32.totalorder %s21, 0
      %p63 = por %p61, %p62
      %p64 = scmp.ne.s32.totalorder %s50, %s51
      %p65 = scmp.eq.s32.totalorder %s22, 1
      %p66 = por %p64, %p65
      %p68 = scmp.ne.s32.totalorder %s51, %s67
      %p69 = scmp.eq.s32.totalorder %s22, 0
      %p70 = por %p68, %p69
      %p71 = scmp.le.s32.totalorder 1, %s16
      %p72 = scmp.lt.s32.totalorder %s16, 3
      %p73 = pnand %p71, %p72
      %p74 = pneg %p73
      // Predicated region
      $region9: #{tpu_custom_call.1} parent=5 // pred_check
        _
      $region10: #{tpu_custom_call.1} parent=5 // pred_check_branch
        %76 = sbr.rel (%p73) target = $region12
      $region11: #{tpu_custom_call.1} parent=5 // pred_region
        %s77 = ssub.s32 %s16, 1
        // Predicated region
        $region13: #{tpu_custom_call.1} parent=11 // pred_check
          %p78 = pneg %p37
        $region14: #{tpu_custom_call.1} parent=11 // pred_check_branch
          %80 = sbr.rel (%p78) target = $region16
        $region15: #{tpu_custom_call.1} parent=11 // pred_region
          %s82 = ssub.s32 8192, 8192
          %83 = vsyncadd [#allocation6], %s82
          %s84 = sshll.u32 [#allocation5], 4
          %s85 = int_to_ptr.vmem [resolvable:$true] %s84
          %90 = dma.hbm_to_vmem [thread:$0]  %s1, 8192, %s85, [#allocation6], 128, 128, 8
        $region16: #{tpu_custom_call.1} parent=11 // pred_fallthru
          _
      $region12: #{tpu_custom_call.1} parent=5 // pred_fallthru
        _
      %p91 = scmp.lt.s32.totalorder %s16, 2
      // Predicated region
      $region17: #{tpu_custom_call.1} parent=5 // pred_check
        %p92 = pneg %p91
      $region18: #{tpu_custom_call.1} parent=5 // pred_check_branch
        %94 = sbr.rel (%p92) target = $region20
      $region19: #{tpu_custom_call.1} parent=5 // pred_region
        _
      $region20: #{tpu_custom_call.1} parent=5 // pred_fallthru
        _
      %p95 = scmp.le.s32.totalorder 1, %s16
      %p96 = scmp.lt.s32.totalorder %s16, 3
      %p97 = pnand %p95, %p96
      %p98 = pneg %p97
      // Predicated region
      $region21: #{tpu_custom_call.1} parent=5 // pred_check
        _
      $region22: #{tpu_custom_call.1} parent=5 // pred_check_branch
        %100 = sbr.rel (%p97) target = $region24
      $region23: #{tpu_custom_call.1} parent=5 // pred_region
        %s101 = ssub.s32 %s16, 1
        // Predicated region
        $region25: #{tpu_custom_call.1} parent=23 // pred_check
          %p102 = pneg %p37
        $region26: #{tpu_custom_call.1} parent=23 // pred_check_branch
          %104 = sbr.rel (%p102) target = $region28
        $region27: #{tpu_custom_call.1} parent=23 // pred_region
          %105 = dma.done [#allocation6], 8192
        $region28: #{tpu_custom_call.1} parent=23 // pred_fallthru
          _
        %p106 = pneg %p37
        %p107 = pneg %p34
        %p108 = pneg %p63
        %p109 = pneg %p60
        %s110 = sand.u32 %s50, 1
        %s111 = scalar_lea.sflag [#allocation7], %s110
        %s112 = sand.u32 %s50, 1
        %s113 = smul.addr %s112, 8
        %s114 = scalar_lea.vmem [#allocation8], %s113
        %s115 = smul.u32 2, %s21
        %s116 = smul.u32 %s21, 16
        loop: start=0, step=1, limit=2
        $region29: #{tpu_custom_call.1} parent=23 // loop_pre_header
          _
        $region30: #{tpu_custom_call.1} parent=23 // loop_header
          %s118 = sphi 0, %s122
          %p119 = scmp.ge.s32.totalorder %s118, 2
        $region31: #{tpu_custom_call.1} parent=23 // loop_header_branch
          %121 = sbr.rel (%p119) target = $region35
        $region32: #{tpu_custom_call.1} parent=23 // loop_body
          %s123 = smul.u32 %s118, 8
          %s124 = sadd.s32 %s116, %s123
          %s125 = smul.u32 %s124, 8
          %s126 = sld [smem:[#allocation4 + %s125]]
          %s127 = scalar_lea.vmem [#allocation5], %s126
          %v128 = vld [vmem:[%s127] sm:$0x1]
          %v129 = vadd.f32 %v128, 0.0
          %s130 = sadd.s32 %s125, 1
          %s131 = sld [smem:[#allocation4 + %s130]]
          %s132 = scalar_lea.vmem [#allocation5], %s131
          %v133 = vld [vmem:[%s132] sm:$0x1]
          %v134 = vadd.f32 %v129, %v133
          %s135 = sadd.s32 %s125, 2
          %s136 = sld [smem:[#allocation4 + %s135]]
          %s137 = scalar_lea.vmem [#allocation5], %s136
          %v138 = vld [vmem:[%s137] sm:$0x1]
          %v139 = vadd.f32 %v134, %v138
          %s140 = sadd.s32 %s125, 3
          %s141 = sld [smem:[#allocation4 + %s140]]
          %s142 = scalar_lea.vmem [#allocation5], %s141
          %v143 = vld [vmem:[%s142] sm:$0x1]
          %v144 = vadd.f32 %v139, %v143
          %s145 = sadd.s32 %s125, 4
          %s146 = sld [smem:[#allocation4 + %s145]]
          %s147 = scalar_lea.vmem [#allocation5], %s146
          %v148 = vld [vmem:[%s147] sm:$0x1]
          %v149 = vadd.f32 %v144, %v148
          %s150 = sadd.s32 %s125, 5
          %s151 = sld [smem:[#allocation4 + %s150]]
          %s152 = scalar_lea.vmem [#allocation5], %s151
          %v153 = vld [vmem:[%s152] sm:$0x1]
          %v154 = vadd.f32 %v149, %v153
          %s155 = sadd.s32 %s125, 6
          %s156 = sld [smem:[#allocation4 + %s155]]
          %s157 = scalar_lea.vmem [#allocation5], %s156
          %v158 = vld [vmem:[%s157] sm:$0x1]
          %v159 = vadd.f32 %v154, %v158
          %s160 = sadd.s32 %s125, 7
          %s161 = sld [smem:[#allocation4 + %s160]]
          %s162 = scalar_lea.vmem [#allocation5], %s161
          %v163 = vld [vmem:[%s162] sm:$0x1]
          %v164 = vadd.f32 %v159, %v163
          %s165 = sadd.s32 %s124, 1
          %s166 = smul.u32 %s165, 8
          %s167 = sld [smem:[#allocation4 + %s166]]
          %s168 = scalar_lea.vmem [#allocation5], %s167
          %v169 = vld [vmem:[%s168] sm:$0x1]
          %v170 = vadd.f32 %v169, 0.0
          %s171 = sadd.s32 %s166, 1
          %s172 = sld [smem:[#allocation4 + %s171]]
          %s173 = scalar_lea.vmem [#allocation5], %s172
          %v174 = vld [vmem:[%s173] sm:$0x1]
          %v175 = vadd.f32 %v170, %v174
          %s176 = sadd.s32 %s166, 2
          %s177 = sld [smem:[#allocation4 + %s176]]
          %s178 = scalar_lea.vmem [#allocation5], %s177
          %v179 = vld [vmem:[%s178] sm:$0x1]
          %v180 = vadd.f32 %v175, %v179
          %s181 = sadd.s32 %s166, 3
          %s182 = sld [smem:[#allocation4 + %s181]]
          %s183 = scalar_lea.vmem [#allocation5], %s182
          %v184 = vld [vmem:[%s183] sm:$0x1]
          %v185 = vadd.f32 %v180, %v184
          %s186 = sadd.s32 %s166, 4
          %s187 = sld [smem:[#allocation4 + %s186]]
          %s188 = scalar_lea.vmem [#allocation5], %s187
          %v189 = vld [vmem:[%s188] sm:$0x1]
          %v190 = vadd.f32 %v185, %v189
          %s191 = sadd.s32 %s166, 5
          %s192 = sld [smem:[#allocation4 + %s191]]
          %s193 = scalar_lea.vmem [#allocation5], %s192
          %v194 = vld [vmem:[%s193] sm:$0x1]
          %v195 = vadd.f32 %v190, %v194
          %s196 = sadd.s32 %s166, 6
          %s197 = sld [smem:[#allocation4 + %s196]]
          %s198 = scalar_lea.vmem [#allocation5], %s197
          %v199 = vld [vmem:[%s198] sm:$0x1]
          %v200 = vadd.f32 %v195, %v199
          %s201 = sadd.s32 %s166, 7
          %s202 = sld [smem:[#allocation4 + %s201]]
          %s203 = scalar_lea.vmem [#allocation5], %s202
          %v204 = vld [vmem:[%s203] sm:$0x1]
          %v205 = vadd.f32 %v200, %v204
          %s206 = sadd.s32 %s124, 2
          %s207 = smul.u32 %s206, 8
          %s208 = sld [smem:[#allocation4 + %s207]]
          %s209 = scalar_lea.vmem [#allocation5], %s208
          %v210 = vld [vmem:[%s209] sm:$0x1]
          %v211 = vadd.f32 %v210, 0.0
          %s212 = sadd.s32 %s207, 1
          %s213 = sld [smem:[#allocation4 + %s212]]
          %s214 = scalar_lea.vmem [#allocation5], %s213
          %v215 = vld [vmem:[%s214] sm:$0x1]
          %v216 = vadd.f32 %v211, %v215
          %s217 = sadd.s32 %s207, 2
          %s218 = sld [smem:[#allocation4 + %s217]]
          %s219 = scalar_lea.vmem [#allocation5], %s218
          %v220 = vld [vmem:[%s219] sm:$0x1]
          %v221 = vadd.f32 %v216, %v220
          %s222 = sadd.s32 %s207, 3
          %s223 = sld [smem:[#allocation4 + %s222]]
          %s224 = scalar_lea.vmem [#allocation5], %s223
          %v225 = vld [vmem:[%s224] sm:$0x1]
          %v226 = vadd.f32 %v221, %v225
          %s227 = sadd.s32 %s207, 4
          %s228 = sld [smem:[#allocation4 + %s227]]
          %s229 = scalar_lea.vmem [#allocation5], %s228
          %v230 = vld [vmem:[%s229] sm:$0x1]
          %v231 = vadd.f32 %v226, %v230
          %s232 = sadd.s32 %s207, 5
          %s233 = sld [smem:[#allocation4 + %s232]]
          %s234 = scalar_lea.vmem [#allocation5], %s233
          %v235 = vld [vmem:[%s234] sm:$0x1]
          %v236 = vadd.f32 %v231, %v235
          %s237 = sadd.s32 %s207, 6
          %s238 = sld [smem:[#allocation4 + %s237]]
          %s239 = scalar_lea.vmem [#allocation5], %s238
          %v240 = vld [vmem:[%s239] sm:$0x1]
          %v241 = vadd.f32 %v236, %v240
          %s242 = sadd.s32 %s207, 7
          %s243 = sld [smem:[#allocation4 + %s242]]
          %s244 = scalar_lea.vmem [#allocation5], %s243
          %v245 = vld [vmem:[%s244] sm:$0x1]
          %v246 = vadd.f32 %v241, %v245
          %s247 = sadd.s32 %s124, 3
          %s248 = smul.u32 %s247, 8
          %s249 = sld [smem:[#allocation4 + %s248]]
          %s250 = scalar_lea.vmem [#allocation5], %s249
          %v251 = vld [vmem:[%s250] sm:$0x1]
          %v252 = vadd.f32 %v251, 0.0
          %s253 = sadd.s32 %s248, 1
          %s254 = sld [smem:[#allocation4 + %s253]]
          %s255 = scalar_lea.vmem [#allocation5], %s254
          %v256 = vld [vmem:[%s255] sm:$0x1]
          %v257 = vadd.f32 %v252, %v256
          %s258 = sadd.s32 %s248, 2
          %s259 = sld [smem:[#allocation4 + %s258]]
          %s260 = scalar_lea.vmem [#allocation5], %s259
          %v261 = vld [vmem:[%s260] sm:$0x1]
          %v262 = vadd.f32 %v257, %v261
          %s263 = sadd.s32 %s248, 3
          %s264 = sld [smem:[#allocation4 + %s263]]
          %s265 = scalar_lea.vmem [#allocation5], %s264
          %v266 = vld [vmem:[%s265] sm:$0x1]
          %v267 = vadd.f32 %v262, %v266
          %s268 = sadd.s32 %s248, 4
          %s269 = sld [smem:[#allocation4 + %s268]]
          %s270 = scalar_lea.vmem [#allocation5], %s269
          %v271 = vld [vmem:[%s270] sm:$0x1]
          %v272 = vadd.f32 %v267, %v271
          %s273 = sadd.s32 %s248, 5
          %s274 = sld [smem:[#allocation4 + %s273]]
          %s275 = scalar_lea.vmem [#allocation5], %s274
          %v276 = vld [vmem:[%s275] sm:$0x1]
          %v277 = vadd.f32 %v272, %v276
          %s278 = sadd.s32 %s248, 6
          %s279 = sld [smem:[#allocation4 + %s278]]
          %s280 = scalar_lea.vmem [#allocation5], %s279
          %v281 = vld [vmem:[%s280] sm:$0x1]
          %v282 = vadd.f32 %v277, %v281
          %s283 = sadd.s32 %s248, 7
          %s284 = sld [smem:[#allocation4 + %s283]]
          %s285 = scalar_lea.vmem [#allocation5], %s284
          %v286 = vld [vmem:[%s285] sm:$0x1]
          %v287 = vadd.f32 %v282, %v286
          %s288 = sadd.s32 %s124, 4
          %s289 = smul.u32 %s288, 8
          %s290 = sld [smem:[#allocation4 + %s289]]
          %s291 = scalar_lea.vmem [#allocation5], %s290
          %v292 = vld [vmem:[%s291] sm:$0x1]
          %v293 = vadd.f32 %v292, 0.0
          %s294 = sadd.s32 %s289, 1
          %s295 = sld [smem:[#allocation4 + %s294]]
          %s296 = scalar_lea.vmem [#allocation5], %s295
          %v297 = vld [vmem:[%s296] sm:$0x1]
          %v298 = vadd.f32 %v293, %v297
          %s299 = sadd.s32 %s289, 2
          %s300 = sld [smem:[#allocation4 + %s299]]
          %s301 = scalar_lea.vmem [#allocation5], %s300
          %v302 = vld [vmem:[%s301] sm:$0x1]
          %v303 = vadd.f32 %v298, %v302
          %s304 = sadd.s32 %s289, 3
          %s305 = sld [smem:[#allocation4 + %s304]]
          %s306 = scalar_lea.vmem [#allocation5], %s305
          %v307 = vld [vmem:[%s306] sm:$0x1]
          %v308 = vadd.f32 %v303, %v307
          %s309 = sadd.s32 %s289, 4
          %s310 = sld [smem:[#allocation4 + %s309]]
          %s311 = scalar_lea.vmem [#allocation5], %s310
          %v312 = vld [vmem:[%s311] sm:$0x1]
          %v313 = vadd.f32 %v308, %v312
          %s314 = sadd.s32 %s289, 5
          %s315 = sld [smem:[#allocation4 + %s314]]
          %s316 = scalar_lea.vmem [#allocation5], %s315
          %v317 = vld [vmem:[%s316] sm:$0x1]
          %v318 = vadd.f32 %v313, %v317
          %s319 = sadd.s32 %s289, 6
          %s320 = sld [smem:[#allocation4 + %s319]]
          %s321 = scalar_lea.vmem [#allocation5], %s320
          %v322 = vld [vmem:[%s321] sm:$0x1]
          %v323 = vadd.f32 %v318, %v322
          %s324 = sadd.s32 %s289, 7
          %s325 = sld [smem:[#allocation4 + %s324]]
          %s326 = scalar_lea.vmem [#allocation5], %s325
          %v327 = vld [vmem:[%s326] sm:$0x1]
          %v328 = vadd.f32 %v323, %v327
          %s329 = sadd.s32 %s124, 5
          %s330 = smul.u32 %s329, 8
          %s331 = sld [smem:[#allocation4 + %s330]]
          %s332 = scalar_lea.vmem [#allocation5], %s331
          %v333 = vld [vmem:[%s332] sm:$0x1]
          %v334 = vadd.f32 %v333, 0.0
          %s335 = sadd.s32 %s330, 1
          %s336 = sld [smem:[#allocation4 + %s335]]
          %s337 = scalar_lea.vmem [#allocation5], %s336
          %v338 = vld [vmem:[%s337] sm:$0x1]
          %v339 = vadd.f32 %v334, %v338
          %s340 = sadd.s32 %s330, 2
          %s341 = sld [smem:[#allocation4 + %s340]]
          %s342 = scalar_lea.vmem [#allocation5], %s341
          %v343 = vld [vmem:[%s342] sm:$0x1]
          %v344 = vadd.f32 %v339, %v343
          %s345 = sadd.s32 %s330, 3
          %s346 = sld [smem:[#allocation4 + %s345]]
          %s347 = scalar_lea.vmem [#allocation5], %s346
          %v348 = vld [vmem:[%s347] sm:$0x1]
          %v349 = vadd.f32 %v344, %v348
          %s350 = sadd.s32 %s330, 4
          %s351 = sld [smem:[#allocation4 + %s350]]
          %s352 = scalar_lea.vmem [#allocation5], %s351
          %v353 = vld [vmem:[%s352] sm:$0x1]
          %v354 = vadd.f32 %v349, %v353
          %s355 = sadd.s32 %s330, 5
          %s356 = sld [smem:[#allocation4 + %s355]]
          %s357 = scalar_lea.vmem [#allocation5], %s356
          %v358 = vld [vmem:[%s357] sm:$0x1]
          %v359 = vadd.f32 %v354, %v358
          %s360 = sadd.s32 %s330, 6
          %s361 = sld [smem:[#allocation4 + %s360]]
          %s362 = scalar_lea.vmem [#allocation5], %s361
          %v363 = vld [vmem:[%s362] sm:$0x1]
          %v364 = vadd.f32 %v359, %v363
          %s365 = sadd.s32 %s330, 7
          %s366 = sld [smem:[#allocation4 + %s365]]
          %s367 = scalar_lea.vmem [#allocation5], %s366
          %v368 = vld [vmem:[%s367] sm:$0x1]
          %v369 = vadd.f32 %v364, %v368
          %s370 = sadd.s32 %s124, 6
          %s371 = smul.u32 %s370, 8
          %s372 = sld [smem:[#allocation4 + %s371]]
          %s373 = scalar_lea.vmem [#allocation5], %s372
          %v374 = vld [vmem:[%s373] sm:$0x1]
          %v375 = vadd.f32 %v374, 0.0
          %s376 = sadd.s32 %s371, 1
          %s377 = sld [smem:[#allocation4 + %s376]]
          %s378 = scalar_lea.vmem [#allocation5], %s377
          %v379 = vld [vmem:[%s378] sm:$0x1]
          %v380 = vadd.f32 %v375, %v379
          %s381 = sadd.s32 %s371, 2
          %s382 = sld [smem:[#allocation4 + %s381]]
          %s383 = scalar_lea.vmem [#allocation5], %s382
          %v384 = vld [vmem:[%s383] sm:$0x1]
          %v385 = vadd.f32 %v380, %v384
          %s386 = sadd.s32 %s371, 3
          %s387 = sld [smem:[#allocation4 + %s386]]
          %s388 = scalar_lea.vmem [#allocation5], %s387
          %v389 = vld [vmem:[%s388] sm:$0x1]
          %v390 = vadd.f32 %v385, %v389
          %s391 = sadd.s32 %s371, 4
          %s392 = sld [smem:[#allocation4 + %s391]]
          %s393 = scalar_lea.vmem [#allocation5], %s392
          %v394 = vld [vmem:[%s393] sm:$0x1]
          %v395 = vadd.f32 %v390, %v394
          %s396 = sadd.s32 %s371, 5
          %s397 = sld [smem:[#allocation4 + %s396]]
          %s398 = scalar_lea.vmem [#allocation5], %s397
          %v399 = vld [vmem:[%s398] sm:$0x1]
          %v400 = vadd.f32 %v395, %v399
          %s401 = sadd.s32 %s371, 6
          %s402 = sld [smem:[#allocation4 + %s401]]
          %s403 = scalar_lea.vmem [#allocation5], %s402
          %v404 = vld [vmem:[%s403] sm:$0x1]
          %v405 = vadd.f32 %v400, %v404
          %s406 = sadd.s32 %s371, 7
          %s407 = sld [smem:[#allocation4 + %s406]]
          %s408 = scalar_lea.vmem [#allocation5], %s407
          %v409 = vld [vmem:[%s408] sm:$0x1]
          %v410 = vadd.f32 %v405, %v409
          %s411 = sadd.s32 %s124, 7
          %s412 = smul.u32 %s411, 8
          %s413 = sld [smem:[#allocation4 + %s412]]
          %s414 = scalar_lea.vmem [#allocation5], %s413
          %v415 = vld [vmem:[%s414] sm:$0x1]
          %v416 = vadd.f32 %v415, 0.0
          %s417 = sadd.s32 %s412, 1
          %s418 = sld [smem:[#allocation4 + %s417]]
          %s419 = scalar_lea.vmem [#allocation5], %s418
          %v420 = vld [vmem:[%s419] sm:$0x1]
          %v421 = vadd.f32 %v416, %v420
          %s422 = sadd.s32 %s412, 2
          %s423 = sld [smem:[#allocation4 + %s422]]
          %s424 = scalar_lea.vmem [#allocation5], %s423
          %v425 = vld [vmem:[%s424] sm:$0x1]
          %v426 = vadd.f32 %v421, %v425
          %s427 = sadd.s32 %s412, 3
          %s428 = sld [smem:[#allocation4 + %s427]]
          %s429 = scalar_lea.vmem [#allocation5], %s428
          %v430 = vld [vmem:[%s429] sm:$0x1]
          %v431 = vadd.f32 %v426, %v430
          %s432 = sadd.s32 %s412, 4
          %s433 = sld [smem:[#allocation4 + %s432]]
          %s434 = scalar_lea.vmem [#allocation5], %s433
          %v435 = vld [vmem:[%s434] sm:$0x1]
          %v436 = vadd.f32 %v431, %v435
          %s437 = sadd.s32 %s412, 5
          %s438 = sld [smem:[#allocation4 + %s437]]
          %s439 = scalar_lea.vmem [#allocation5], %s438
          %v440 = vld [vmem:[%s439] sm:$0x1]
          %v441 = vadd.f32 %v436, %v440
          %s442 = sadd.s32 %s412, 6
          %s443 = sld [smem:[#allocation4 + %s442]]
          %s444 = scalar_lea.vmem [#allocation5], %s443
          %v445 = vld [vmem:[%s444] sm:$0x1]
          %v446 = vadd.f32 %v441, %v445
          %s447 = sadd.s32 %s412, 7
          %s448 = sld [smem:[#allocation4 + %s447]]
          %s449 = scalar_lea.vmem [#allocation5], %s448
          %v450 = vld [vmem:[%s449] sm:$0x1]
          %v451 = vadd.f32 %v446, %v450
          %v453 = vrot.slane %v205, 7
          %v456 = vrot.slane %v246, 6
          %v459 = vrot.slane %v287, 5
          %v462 = vrot.slane %v328, 4
          %v465 = vrot.slane %v369, 3
          %v468 = vrot.slane %v410, 2
          %v471 = vrot.slane %v451, 1
          %vm473 = vcmask 1040384
          %v474 = vsel %vm473, %v164, %v453
          %vm475 = vcmask 1041408
          %v476 = vsel %vm475, %v474, %v456
          %vm477 = vcmask 1042432
          %v478 = vsel %vm477, %v476, %v459
          %vm479 = vcmask 1043456
          %v480 = vsel %vm479, %v478, %v462
          %vm481 = vcmask 1044480
          %v482 = vsel %vm481, %v480, %v465
          %vm483 = vcmask 1045504
          %v484 = vsel %vm483, %v482, %v468
          %vm485 = vcmask 1046528
          %v486 = vsel %vm485, %v484, %v471
          %v487 = vmul.f32 %v486, 0.125
          %s488 = scalar_lea.vmem [#allocation2], %s123
          %489 = vst [vmem:[%s488] sm:$0xff] %v487
        $region33: #{tpu_custom_call.1} parent=23 // loop_footer
          %s122 = sadd.s32 1, %s118
        $region34: #{tpu_custom_call.1} parent=23 // loop_footer_branch
          %117 = sbr.rel target = $region30
        $region35: #{tpu_custom_call.1} parent=23 // loop_exit
          _
        %v490 = vld [vmem:[#allocation2] sm:$0xff]
        %v491 = vld [vmem:[#allocation2 + $0x8] sm:$0xff]
        %v492 = vpack.c.bf16 %v491, %v490
        %v494 = vunpack.c.l.b16 %v492
        %v495 = vunpack.c.h.b16 %v492
        %v496 = vpack.c.b16 %v494, %v494
        %v497 = vpack.c.b16 %v495, %v495
        %500 = vst [vmem:[%s114] sm:$0xf] %v496
        %501 = vst [vmem:[%s114 + $0x4] sm:$0xf] %v497
        %s502 = sand.u32 %s50, 1
        %s503 = scalar_lea.sflag [#allocation7], %s502
        %s504 = sand.u32 %s50, 1
        %s505 = smul.addr %s504, 8
        %s506 = scalar_lea.vmem [#allocation8], %s505
        // Predicated region
        $region36: #{tpu_custom_call.1} parent=23 // pred_check
          %p507 = pneg %p60
        $region37: #{tpu_custom_call.1} parent=23 // pred_check_branch
          %509 = sbr.rel (%p507) target = $region39
        $region38: #{tpu_custom_call.1} parent=23 // pred_region
          %s510 = smul.u32 2, %s21
          %s512 = ssub.s32 128, 128
          %513 = vsyncadd %s503, %s512
          %s514 = smul.addr %s510, 64
          %s515 = scalar_lea.hbm %s2, %s514
          %s516 = sshll.u32 %s506, 4
          %s517 = int_to_ptr.vmem [resolvable:$true] %s516
          %522 = dma.vmem_to_hbm [thread:$0]  %s517, 128, %s515, %s503, 64, 64, 4
        $region39: #{tpu_custom_call.1} parent=23 // pred_fallthru
          _
      $region24: #{tpu_custom_call.1} parent=5 // pred_fallthru
        _
      %p523 = scmp.le.s32.totalorder 2, %s16
      // Predicated region
      $region40: #{tpu_custom_call.1} parent=5 // pred_check
        %p524 = pneg %p523
      $region41: #{tpu_custom_call.1} parent=5 // pred_check_branch
        %526 = sbr.rel (%p524) target = $region43
      $region42: #{tpu_custom_call.1} parent=5 // pred_region
        %s527 = ssub.s32 %s16, 2
        // Predicated region
        $region44: #{tpu_custom_call.1} parent=42 // pred_check
          %p528 = pneg %p66
        $region45: #{tpu_custom_call.1} parent=42 // pred_check_branch
          %530 = sbr.rel (%p528) target = $region47
        $region46: #{tpu_custom_call.1} parent=42 // pred_region
          %s531 = sand.u32 %s51, 1
          %s532 = scalar_lea.sflag [#allocation7], %s531
          %s533 = sand.u32 %s51, 1
          %s534 = smul.addr %s533, 8
          %s535 = scalar_lea.vmem [#allocation8], %s534
          %536 = dma.done %s532, 128
        $region47: #{tpu_custom_call.1} parent=42 // pred_fallthru
          _
      $region43: #{tpu_custom_call.1} parent=5 // pred_fallthru
        _
    $region6: #{tpu_custom_call.1} parent=1 // loop_footer
      %s20 = sadd.s32 1, %s16
    $region7: #{tpu_custom_call.1} parent=1 // loop_footer_branch
      %15 = sbr.rel target = $region3
    $region8: #{tpu_custom_call.1} parent=1 // loop_exit
      _
    %537 = vsyncpa [#allocation6], 1
    %s538 = scalar_lea.sflag [#allocation6], 1
    %539 = vsyncpa %s538, 1
    %540 = vsyncpa [#allocation7], 1
    %s541 = scalar_lea.sflag [#allocation7], 1
    %542 = vsyncpa %s541, 1

</llo_original>
